<compile_context>
chip_gen: v5e
topology: v5e:2x2
jax: 0.10.0
libtpu: 0.0.40
codegen_flags: <defaults>
</compile_context>

<pallas_src>
import jax
import jax.numpy as jnp
from jax.experimental import pallas as pl
from jax.experimental.pallas import tpu as pltpu


# ---------------------------------------------------------------------------
# Fused forward kernel.  One grid step processes a tile of TILE_N samples
# (static unroll); activations live in VMEM values / tiny scratch refs.
#   x_ref   : (TILE_N, 28, 28)
#   w1e/w1o : (140, 120) banded conv1 weights for horizontal pool tap 0 / 1
#   b1      : (1, 120)   bias tiled per output column  (col = j*10 + o)
#   s1e/s1o : (12, 24)   even/odd row-selection matrices (vertical pool 1)
#   w2e/w2o : (600, 80)  banded conv2 weights for horizontal pool tap 0 / 1
#   b2      : (1, 80)
#   s2e/s2o : (4, 8)     even/odd row-selection matrices (vertical pool 2)
#   wfc     : (320, 10)  fc weight, rows permuted to match the in-kernel
#                        flatten order (PyTorch NCHW flatten folded in)
#   bfc     : (1, 10)
#   out_ref : (TILE_N, 10)
# ---------------------------------------------------------------------------
def _net_kernel(x_ref, w1e_ref, w1o_ref, b1_ref, s1e_ref, s1o_ref,
                w2e_ref, w2o_ref, b2_ref, s2e_ref, s2o_ref,
                wfc_ref, bfc_ref, out_ref, a1_ref, a2_ref):
    tile_n = x_ref.shape[0]
    for s in range(tile_n):                       # static unroll over the tile
        # ---- conv1 (5x5, 1->10) + 2x2 maxpool + relu ----------------------
        # Row-slab concat:  xst[r, kh*28 + w] = x[r+kh, w]      -> (24, 140)
        xst = jnp.concatenate(
            [x_ref[s, pl.ds(kh, 24), :] for kh in range(5)], axis=1)
        # Banded matmuls: y_dj[r, j*10+o] = conv1[r, 2j+dj, o]; max over dj.
        t = jnp.maximum(
            jnp.dot(xst, w1e_ref[...], preferred_element_type=jnp.float32),
            jnp.dot(xst, w1o_ref[...], preferred_element_type=jnp.float32))
        # Vertical 2x pooling via even/odd row selection + max.
        pooled = jnp.maximum(
            jnp.dot(s1e_ref[...], t, preferred_element_type=jnp.float32),
            jnp.dot(s1o_ref[...], t, preferred_element_type=jnp.float32))
        a1_ref[...] = jnp.maximum(pooled + b1_ref[...], 0.0)      # (12, 120)

        # ---- conv2 (5x5, 10->20) + 2x2 maxpool + relu ----------------------
        # xst2[p, kh*120 + col] = a1[p+kh, col]                  -> (8, 600)
        xst2 = jnp.concatenate(
            [a1_ref[pl.ds(kh, 8), :] for kh in range(5)], axis=1)
        t2 = jnp.maximum(
            jnp.dot(xst2, w2e_ref[...], preferred_element_type=jnp.float32),
            jnp.dot(xst2, w2o_ref[...], preferred_element_type=jnp.float32))
        pooled2 = jnp.maximum(
            jnp.dot(s2e_ref[...], t2, preferred_element_type=jnp.float32),
            jnp.dot(s2o_ref[...], t2, preferred_element_type=jnp.float32))
        a2_ref[...] = jnp.maximum(pooled2 + b2_ref[...], 0.0)     # (4, 80)

        # ---- flatten (NCHW order folded into wfc) + fc + log_softmax -------
        a2row = jnp.concatenate(
            [a2_ref[pl.ds(u, 1), :] for u in range(4)], axis=1)   # (1, 320)
        z = jnp.dot(a2row, wfc_ref[...],
                    preferred_element_type=jnp.float32) + bfc_ref[...]
        m = jnp.max(z, axis=-1, keepdims=True)
        lse = m + jnp.log(jnp.sum(jnp.exp(z - m), axis=-1, keepdims=True))
        out_ref[pl.ds(s, 1), :] = z - lse


# ---------------------------------------------------------------------------
# Wrapper-side weight rearrangements (tiny, done once under jit).
# ---------------------------------------------------------------------------
def _banded_w1(w1, dj):
    # (140, 120): W[kh*28 + 2j + dj + kw, j*10 + o] = w1[o, 0, kh, kw]
    kh = jnp.arange(5).reshape(5, 1, 1, 1)
    kw = jnp.arange(5).reshape(1, 5, 1, 1)
    j = jnp.arange(12).reshape(1, 1, 12, 1)
    o = jnp.arange(10).reshape(1, 1, 1, 10)
    shp = (5, 5, 12, 10)
    rows = jnp.broadcast_to(kh * 28 + 2 * j + dj + kw, shp)
    cols = jnp.broadcast_to(j * 10 + o, shp)
    vals = jnp.broadcast_to(
        jnp.transpose(w1[:, 0], (1, 2, 0))[:, :, None, :], shp)
    return jnp.zeros((140, 120), jnp.float32).at[rows, cols].set(vals)


def _banded_w2(w2, dv):
    # (600, 80): W[kh*120 + (2v+dv+kw)*10 + c, v*20 + o] = w2[o, c, kh, kw]
    kh = jnp.arange(5).reshape(5, 1, 1, 1, 1)
    kw = jnp.arange(5).reshape(1, 5, 1, 1, 1)
    v = jnp.arange(4).reshape(1, 1, 4, 1, 1)
    c = jnp.arange(10).reshape(1, 1, 1, 10, 1)
    o = jnp.arange(20).reshape(1, 1, 1, 1, 20)
    shp = (5, 5, 4, 10, 20)
    rows = jnp.broadcast_to(kh * 120 + (2 * v + dv + kw) * 10 + c, shp)
    cols = jnp.broadcast_to(v * 20 + o, shp)
    vals = jnp.broadcast_to(
        jnp.transpose(w2, (2, 3, 1, 0))[:, :, None, :, :], shp)
    return jnp.zeros((600, 80), jnp.float32).at[rows, cols].set(vals)


def _rearranged_wfc(wfc):
    # (320, 10): W[u*80 + v*20 + o2, k] = wfc[k, o2*16 + u*4 + v]
    # (matches the kernel's flatten order [u*80 + v*20 + o2] against PyTorch's
    #  NCHW flatten index o2*16 + u*4 + v)
    u = jnp.arange(4).reshape(4, 1, 1)
    v = jnp.arange(4).reshape(1, 4, 1)
    o2 = jnp.arange(20).reshape(1, 1, 20)
    rows = jnp.broadcast_to(u * 80 + v * 20 + o2, (4, 4, 20)).reshape(-1)
    src = jnp.broadcast_to(o2 * 16 + u * 4 + v, (4, 4, 20)).reshape(-1)
    return jnp.zeros((320, 10), jnp.float32).at[rows, :].set(wfc[:, src].T)


def _even_odd_selectors(n_out):
    idx = jnp.arange(n_out)
    e = jnp.zeros((n_out, 2 * n_out), jnp.float32).at[idx, 2 * idx].set(1.0)
    o = jnp.zeros((n_out, 2 * n_out), jnp.float32).at[idx, 2 * idx + 1].set(1.0)
    return e, o


# ---------------------------------------------------------------------------
# Public forward pass (matches PyTorch Net.forward semantics).
# ---------------------------------------------------------------------------
def net_forward(x_nchw, params):
    w1, b1, w2, b2, wfc, bfc = params
    n = x_nchw.shape[0]
    assert x_nchw.shape[1:] == (1, 28, 28), "Net is hard-wired to 1x28x28"
    x = x_nchw.reshape(n, 28, 28).astype(jnp.float32)

    w1e, w1o = _banded_w1(w1, 0), _banded_w1(w1, 1)
    w2e, w2o = _banded_w2(w2, 0), _banded_w2(w2, 1)
    wfc_r = _rearranged_wfc(wfc)
    s1e, s1o = _even_odd_selectors(12)
    s2e, s2o = _even_odd_selectors(4)
    b1r = jnp.tile(b1.astype(jnp.float32), 12).reshape(1, 120)
    b2r = jnp.tile(b2.astype(jnp.float32), 4).reshape(1, 80)
    bfcr = bfc.astype(jnp.float32).reshape(1, 10)

    # Batch tile: 8 samples/step when the batch divides evenly (keeps the
    # (8,128) output-block constraint happy); otherwise whole batch per step.
    tile_n = 8 if n % 8 == 0 else n
    grid = (n // tile_n,)

    def fixed(*shape):
        return pl.BlockSpec(shape, lambda i, _s=shape: (0,) * len(_s))

    return pl.pallas_call(
        _net_kernel,
        out_shape=jax.ShapeDtypeStruct((n, 10), jnp.float32),
        grid=grid,
        in_specs=[
            pl.BlockSpec((tile_n, 28, 28), lambda i: (i, 0, 0)),
            fixed(140, 120), fixed(140, 120), fixed(1, 120),
            fixed(12, 24), fixed(12, 24),
            fixed(600, 80), fixed(600, 80), fixed(1, 80),
            fixed(4, 8), fixed(4, 8),
            fixed(320, 10), fixed(1, 10),
        ],
        out_specs=pl.BlockSpec((tile_n, 10), lambda i: (i, 0)),
        scratch_shapes=[pltpu.VMEM((12, 120), jnp.float32),
                        pltpu.VMEM((4, 80), jnp.float32)],
        compiler_params=pltpu.CompilerParams(
            dimension_semantics=("parallel",)),
    )(x, w1e, w1o, b1r, s1e, s1o, w2e, w2o, b2r, s2e, s2o, wfc_r, bfcr)


# ---------------------------------------------------------------------------
# Pure-JAX reference (for validation only).
# ---------------------------------------------------------------------------
def reference_forward(x_nchw, params):
    w1, b1, w2, b2, wfc, bfc = params
    hp = jax.lax.Precision.HIGHEST
    dn = ("NCHW", "OIHW", "NCHW")
    y = jax.lax.conv_general_dilated(x_nchw, w1, (1, 1), "VALID",
                                     dimension_numbers=dn, precision=hp)
    y = y + b1.reshape(1, -1, 1, 1)
    y = jax.lax.reduce_window(y, -jnp.inf, jax.lax.max,
                              (1, 1, 2, 2), (1, 1, 2, 2), "VALID")
    y = jnp.maximum(y, 0.0)
    y = jax.lax.conv_general_dilated(y, w2, (1, 1), "VALID",
                                     dimension_numbers=dn, precision=hp)
    y = y + b2.reshape(1, -1, 1, 1)
    y = jax.lax.reduce_window(y, -jnp.inf, jax.lax.max,
                              (1, 1, 2, 2), (1, 1, 2, 2), "VALID")
    y = jnp.maximum(y, 0.0)
    z = y.reshape(y.shape[0], -1) @ wfc.T + bfc
    return jax.nn.log_softmax(z, axis=-1)


def init_params(key):
    k = jax.random.split(key, 6)
    w1 = jax.random.normal(k[0], (10, 1, 5, 5), jnp.float32) * 0.1
    b1 = jax.random.normal(k[1], (10,), jnp.float32) * 0.1
    w2 = jax.random.normal(k[2], (20, 10, 5, 5), jnp.float32) * 0.05
    b2 = jax.random.normal(k[3], (20,), jnp.float32) * 0.05
    wfc = jax.random.normal(k[4], (10, 320), jnp.float32) * 0.05
    bfc = jax.random.normal(k[5], (10,), jnp.float32) * 0.05
    return w1, b1, w2, b2, wfc, bfc


if __name__ == "__main__":
    key = jax.random.PRNGKey(0)
    kx, kp = jax.random.split(key)
    # MNIST-sized input is required by the architecture (320 = 20*4*4 flatten)
    x = jax.random.normal(kx, (2, 1, 28, 28), jnp.float32)
    params = init_params(kp)

    out = jax.jit(net_forward)(x, params)
    out = jax.block_until_ready(out)

    assert out.shape == (2, 10)
    assert bool(jnp.all(jnp.isfinite(out)))

    ref = jax.block_until_ready(jax.jit(reference_forward)(x, params))
    max_err = float(jnp.max(jnp.abs(out - ref)))
    assert max_err < 2e-2, f"mismatch vs reference: {max_err}"

    print("KERNEL_OK")
</pallas_src>

<mosaic_0001>
module attributes {stable_mosaic.version = 11 : i64} {
  func.func @_net_kernel(%arg0: i32, %arg1: memref<2x28x28xf32, #tpu.memory_space<vmem>>, %arg2: memref<140x120xf32, #tpu.memory_space<vmem>>, %arg3: memref<140x120xf32, #tpu.memory_space<vmem>>, %arg4: memref<1x120xf32, #tpu.memory_space<vmem>>, %arg5: memref<12x24xf32, #tpu.memory_space<vmem>>, %arg6: memref<12x24xf32, #tpu.memory_space<vmem>>, %arg7: memref<600x80xf32, #tpu.memory_space<vmem>>, %arg8: memref<600x80xf32, #tpu.memory_space<vmem>>, %arg9: memref<1x80xf32, #tpu.memory_space<vmem>>, %arg10: memref<4x8xf32, #tpu.memory_space<vmem>>, %arg11: memref<4x8xf32, #tpu.memory_space<vmem>>, %arg12: memref<320x10xf32, #tpu.memory_space<vmem>>, %arg13: memref<1x10xf32, #tpu.memory_space<vmem>>, %arg14: memref<2x10xf32, #tpu.memory_space<vmem>>, %arg15: memref<12x120xf32, #tpu.memory_space<vmem>>, %arg16: memref<4x80xf32, #tpu.memory_space<vmem>>) attributes {dimension_semantics = [#tpu.dimension_semantics<parallel>], iteration_bounds = array<i64: 1>, scalar_prefetch = 0 : i64, scratch_operands = 2 : i64, tpu.core_type = #tpu.core_type<tc>, window_params = [{transform_indices = @transform_0, window_bounds = array<i64: 2, 28, 28>}, {pipeline_mode = #tpu.pipeline_mode<synchronous>, transform_indices = @transform_1, window_bounds = array<i64: 140, 120>}, {pipeline_mode = #tpu.pipeline_mode<synchronous>, transform_indices = @transform_2, window_bounds = array<i64: 140, 120>}, {pipeline_mode = #tpu.pipeline_mode<synchronous>, transform_indices = @transform_3, window_bounds = array<i64: 1, 120>}, {pipeline_mode = #tpu.pipeline_mode<synchronous>, transform_indices = @transform_4, window_bounds = array<i64: 12, 24>}, {pipeline_mode = #tpu.pipeline_mode<synchronous>, transform_indices = @transform_5, window_bounds = array<i64: 12, 24>}, {pipeline_mode = #tpu.pipeline_mode<synchronous>, transform_indices = @transform_6, window_bounds = array<i64: 600, 80>}, {pipeline_mode = #tpu.pipeline_mode<synchronous>, transform_indices = @transform_7, window_bounds = array<i64: 600, 80>}, {pipeline_mode = #tpu.pipeline_mode<synchronous>, transform_indices = @transform_8, window_bounds = array<i64: 1, 80>}, {pipeline_mode = #tpu.pipeline_mode<synchronous>, transform_indices = @transform_9, window_bounds = array<i64: 4, 8>}, {pipeline_mode = #tpu.pipeline_mode<synchronous>, transform_indices = @transform_10, window_bounds = array<i64: 4, 8>}, {pipeline_mode = #tpu.pipeline_mode<synchronous>, transform_indices = @transform_11, window_bounds = array<i64: 320, 10>}, {pipeline_mode = #tpu.pipeline_mode<synchronous>, transform_indices = @transform_12, window_bounds = array<i64: 1, 10>}, {transform_indices = @transform_13, window_bounds = array<i64: 2, 10>}]} {
    %c0 = arith.constant 0 : index
    %c0_0 = arith.constant 0 : index
    %c0_1 = arith.constant 0 : index
    %0 = vector.load %arg1[%c0, %c0_0, %c0_1] : memref<2x28x28xf32, #tpu.memory_space<vmem>>, vector<1x24x28xf32>
    %1 = vector.shape_cast %0 : vector<1x24x28xf32> to vector<24x28xf32>
    %c0_2 = arith.constant 0 : index
    %c1 = arith.constant 1 : index
    %c0_3 = arith.constant 0 : index
    %2 = vector.load %arg1[%c0_2, %c1, %c0_3] : memref<2x28x28xf32, #tpu.memory_space<vmem>>, vector<1x24x28xf32>
    %3 = vector.shape_cast %2 : vector<1x24x28xf32> to vector<24x28xf32>
    %c0_4 = arith.constant 0 : index
    %c2 = arith.constant 2 : index
    %c0_5 = arith.constant 0 : index
    %4 = vector.load %arg1[%c0_4, %c2, %c0_5] : memref<2x28x28xf32, #tpu.memory_space<vmem>>, vector<1x24x28xf32>
    %5 = vector.shape_cast %4 : vector<1x24x28xf32> to vector<24x28xf32>
    %c0_6 = arith.constant 0 : index
    %c3 = arith.constant 3 : index
    %c0_7 = arith.constant 0 : index
    %6 = vector.load %arg1[%c0_6, %c3, %c0_7] : memref<2x28x28xf32, #tpu.memory_space<vmem>>, vector<1x24x28xf32>
    %7 = vector.shape_cast %6 : vector<1x24x28xf32> to vector<24x28xf32>
    %c0_8 = arith.constant 0 : index
    %c4 = arith.constant 4 : index
    %c0_9 = arith.constant 0 : index
    %8 = vector.load %arg1[%c0_8, %c4, %c0_9] : memref<2x28x28xf32, #tpu.memory_space<vmem>>, vector<1x24x28xf32>
    %9 = vector.shape_cast %8 : vector<1x24x28xf32> to vector<24x28xf32>
    %10 = tpu.concatenate %1, %3, %5, %7, %9 in 1 : vector<24x28xf32>, vector<24x28xf32>, vector<24x28xf32>, vector<24x28xf32>, vector<24x28xf32> -> vector<24x140xf32>
    %c0_10 = arith.constant 0 : index
    %c0_11 = arith.constant 0 : index
    %11 = vector.load %arg2[%c0_10, %c0_11] : memref<140x120xf32, #tpu.memory_space<vmem>>, vector<140x120xf32>
    %cst = arith.constant dense<0.000000e+00> : vector<24x120xf32>
    %12 = tpu.matmul %10, %11, %cst {dimension_numbers = #tpu.dot_dimension_numbers<[1], [0], [0], [1], [0, 0, 1, 1], [], []>} : vector<24x140xf32>, vector<140x120xf32>, vector<24x120xf32> -> vector<24x120xf32>
    %c0_12 = arith.constant 0 : index
    %c0_13 = arith.constant 0 : index
    %13 = vector.load %arg3[%c0_12, %c0_13] : memref<140x120xf32, #tpu.memory_space<vmem>>, vector<140x120xf32>
    %cst_14 = arith.constant dense<0.000000e+00> : vector<24x120xf32>
    %14 = tpu.matmul %10, %13, %cst_14 {dimension_numbers = #tpu.dot_dimension_numbers<[1], [0], [0], [1], [0, 0, 1, 1], [], []>} : vector<24x140xf32>, vector<140x120xf32>, vector<24x120xf32> -> vector<24x120xf32>
    %15 = arith.maximumf %12, %14 : vector<24x120xf32>
    %c0_15 = arith.constant 0 : index
    %c0_16 = arith.constant 0 : index
    %16 = vector.load %arg5[%c0_15, %c0_16] : memref<12x24xf32, #tpu.memory_space<vmem>>, vector<12x24xf32>
    %cst_17 = arith.constant dense<0.000000e+00> : vector<12x120xf32>
    %17 = tpu.matmul %16, %15, %cst_17 {dimension_numbers = #tpu.dot_dimension_numbers<[1], [0], [0], [1], [0, 0, 1, 1], [], []>} : vector<12x24xf32>, vector<24x120xf32>, vector<12x120xf32> -> vector<12x120xf32>
    %c0_18 = arith.constant 0 : index
    %c0_19 = arith.constant 0 : index
    %18 = vector.load %arg6[%c0_18, %c0_19] : memref<12x24xf32, #tpu.memory_space<vmem>>, vector<12x24xf32>
    %cst_20 = arith.constant dense<0.000000e+00> : vector<12x120xf32>
    %19 = tpu.matmul %18, %15, %cst_20 {dimension_numbers = #tpu.dot_dimension_numbers<[1], [0], [0], [1], [0, 0, 1, 1], [], []>} : vector<12x24xf32>, vector<24x120xf32>, vector<12x120xf32> -> vector<12x120xf32>
    %20 = arith.maximumf %17, %19 : vector<12x120xf32>
    %c0_21 = arith.constant 0 : index
    %c0_22 = arith.constant 0 : index
    %21 = vector.load %arg4[%c0_21, %c0_22] : memref<1x120xf32, #tpu.memory_space<vmem>>, vector<1x120xf32>
    %22 = vector.broadcast %21 : vector<1x120xf32> to vector<12x120xf32>
    %23 = arith.addf %20, %22 : vector<12x120xf32>
    %cst_23 = arith.constant 0.000000e+00 : f32
    %24 = vector.broadcast %cst_23 : f32 to vector<12x120xf32>
    %25 = arith.maximumf %23, %24 : vector<12x120xf32>
    %c0_24 = arith.constant 0 : index
    %c0_25 = arith.constant 0 : index
    %26 = vector.load %arg15[%c0_24, %c0_25] : memref<12x120xf32, #tpu.memory_space<vmem>>, vector<12x120xf32>
    tpu.vector_store %arg15[%c0_24, %c0_25], %25 {strides = array<i32>} : memref<12x120xf32, #tpu.memory_space<vmem>>, vector<12x120xf32>,
    %c0_26 = arith.constant 0 : index
    %c0_27 = arith.constant 0 : index
    %27 = vector.load %arg15[%c0_26, %c0_27] : memref<12x120xf32, #tpu.memory_space<vmem>>, vector<8x120xf32>
    %c1_28 = arith.constant 1 : index
    %c0_29 = arith.constant 0 : index
    %28 = vector.load %arg15[%c1_28, %c0_29] : memref<12x120xf32, #tpu.memory_space<vmem>>, vector<8x120xf32>
    %c2_30 = arith.constant 2 : index
    %c0_31 = arith.constant 0 : index
    %29 = vector.load %arg15[%c2_30, %c0_31] : memref<12x120xf32, #tpu.memory_space<vmem>>, vector<8x120xf32>
    %c3_32 = arith.constant 3 : index
    %c0_33 = arith.constant 0 : index
    %30 = vector.load %arg15[%c3_32, %c0_33] : memref<12x120xf32, #tpu.memory_space<vmem>>, vector<8x120xf32>
    %c4_34 = arith.constant 4 : index
    %c0_35 = arith.constant 0 : index
    %31 = vector.load %arg15[%c4_34, %c0_35] : memref<12x120xf32, #tpu.memory_space<vmem>>, vector<8x120xf32>
    %32 = tpu.concatenate %27, %28, %29, %30, %31 in 1 : vector<8x120xf32>, vector<8x120xf32>, vector<8x120xf32>, vector<8x120xf32>, vector<8x120xf32> -> vector<8x600xf32>
    %c0_36 = arith.constant 0 : index
    %c0_37 = arith.constant 0 : index
    %33 = vector.load %arg7[%c0_36, %c0_37] : memref<600x80xf32, #tpu.memory_space<vmem>>, vector<600x80xf32>
    %cst_38 = arith.constant dense<0.000000e+00> : vector<8x80xf32>
    %34 = tpu.matmul %32, %33, %cst_38 {dimension_numbers = #tpu.dot_dimension_numbers<[1], [0], [0], [1], [0, 0, 1, 1], [], []>} : vector<8x600xf32>, vector<600x80xf32>, vector<8x80xf32> -> vector<8x80xf32>
    %c0_39 = arith.constant 0 : index
    %c0_40 = arith.constant 0 : index
    %35 = vector.load %arg8[%c0_39, %c0_40] : memref<600x80xf32, #tpu.memory_space<vmem>>, vector<600x80xf32>
    %cst_41 = arith.constant dense<0.000000e+00> : vector<8x80xf32>
    %36 = tpu.matmul %32, %35, %cst_41 {dimension_numbers = #tpu.dot_dimension_numbers<[1], [0], [0], [1], [0, 0, 1, 1], [], []>} : vector<8x600xf32>, vector<600x80xf32>, vector<8x80xf32> -> vector<8x80xf32>
    %37 = arith.maximumf %34, %36 : vector<8x80xf32>
    %c0_42 = arith.constant 0 : index
    %c0_43 = arith.constant 0 : index
    %38 = vector.load %arg10[%c0_42, %c0_43] : memref<4x8xf32, #tpu.memory_space<vmem>>, vector<4x8xf32>
    %cst_44 = arith.constant dense<0.000000e+00> : vector<4x80xf32>
    %39 = tpu.matmul %38, %37, %cst_44 {dimension_numbers = #tpu.dot_dimension_numbers<[1], [0], [0], [1], [0, 0, 1, 1], [], []>} : vector<4x8xf32>, vector<8x80xf32>, vector<4x80xf32> -> vector<4x80xf32>
    %c0_45 = arith.constant 0 : index
    %c0_46 = arith.constant 0 : index
    %40 = vector.load %arg11[%c0_45, %c0_46] : memref<4x8xf32, #tpu.memory_space<vmem>>, vector<4x8xf32>
    %cst_47 = arith.constant dense<0.000000e+00> : vector<4x80xf32>
    %41 = tpu.matmul %40, %37, %cst_47 {dimension_numbers = #tpu.dot_dimension_numbers<[1], [0], [0], [1], [0, 0, 1, 1], [], []>} : vector<4x8xf32>, vector<8x80xf32>, vector<4x80xf32> -> vector<4x80xf32>
    %42 = arith.maximumf %39, %41 : vector<4x80xf32>
    %c0_48 = arith.constant 0 : index
    %c0_49 = arith.constant 0 : index
    %43 = vector.load %arg9[%c0_48, %c0_49] : memref<1x80xf32, #tpu.memory_space<vmem>>, vector<1x80xf32>
    %44 = vector.broadcast %43 : vector<1x80xf32> to vector<4x80xf32>
    %45 = arith.addf %42, %44 : vector<4x80xf32>
    %cst_50 = arith.constant 0.000000e+00 : f32
    %46 = vector.broadcast %cst_50 : f32 to vector<4x80xf32>
    %47 = arith.maximumf %45, %46 : vector<4x80xf32>
    %c0_51 = arith.constant 0 : index
    %c0_52 = arith.constant 0 : index
    %48 = vector.load %arg16[%c0_51, %c0_52] : memref<4x80xf32, #tpu.memory_space<vmem>>, vector<4x80xf32>
    tpu.vector_store %arg16[%c0_51, %c0_52], %47 {strides = array<i32>} : memref<4x80xf32, #tpu.memory_space<vmem>>, vector<4x80xf32>,
    %c0_53 = arith.constant 0 : index
    %c0_54 = arith.constant 0 : index
    %49 = vector.load %arg16[%c0_53, %c0_54] : memref<4x80xf32, #tpu.memory_space<vmem>>, vector<1x80xf32>
    %c1_55 = arith.constant 1 : index
    %c0_56 = arith.constant 0 : index
    %50 = vector.load %arg16[%c1_55, %c0_56] : memref<4x80xf32, #tpu.memory_space<vmem>>, vector<1x80xf32>
    %c2_57 = arith.constant 2 : index
    %c0_58 = arith.constant 0 : index
    %51 = vector.load %arg16[%c2_57, %c0_58] : memref<4x80xf32, #tpu.memory_space<vmem>>, vector<1x80xf32>
    %c3_59 = arith.constant 3 : index
    %c0_60 = arith.constant 0 : index
    %52 = vector.load %arg16[%c3_59, %c0_60] : memref<4x80xf32, #tpu.memory_space<vmem>>, vector<1x80xf32>
    %53 = tpu.concatenate %49, %50, %51, %52 in 1 : vector<1x80xf32>, vector<1x80xf32>, vector<1x80xf32>, vector<1x80xf32> -> vector<1x320xf32>
    %c0_61 = arith.constant 0 : index
    %c0_62 = arith.constant 0 : index
    %54 = vector.load %arg12[%c0_61, %c0_62] : memref<320x10xf32, #tpu.memory_space<vmem>>, vector<320x10xf32>
    %cst_63 = arith.constant dense<0.000000e+00> : vector<1x10xf32>
    %55 = tpu.matmul %53, %54, %cst_63 {dimension_numbers = #tpu.dot_dimension_numbers<[1], [0], [0], [1], [0, 0, 1, 1], [], []>} : vector<1x320xf32>, vector<320x10xf32>, vector<1x10xf32> -> vector<1x10xf32>
    %c0_64 = arith.constant 0 : index
    %c0_65 = arith.constant 0 : index
    %56 = vector.load %arg13[%c0_64, %c0_65] : memref<1x10xf32, #tpu.memory_space<vmem>>, vector<1x10xf32>
    %57 = arith.addf %55, %56 : vector<1x10xf32>
    %cst_66 = arith.constant dense<0xFF800000> : vector<1xf32>
    %58 = vector.multi_reduction <maximumf>, %57, %cst_66 [1] : vector<1x10xf32> to vector<1xf32>
    %59 = vector.shape_cast %58 : vector<1xf32> to vector<1x1xf32>
    %60 = vector.broadcast %59 : vector<1x1xf32> to vector<1x10xf32>
    %61 = arith.subf %57, %60 : vector<1x10xf32>
    %62 = math.exp %61 : vector<1x10xf32>
    %cst_67 = arith.constant dense<0.000000e+00> : vector<1xf32>
    %63 = vector.multi_reduction <add>, %62, %cst_67 [1] : vector<1x10xf32> to vector<1xf32>
    %64 = vector.shape_cast %63 : vector<1xf32> to vector<1x1xf32>
    %65 = math.log %64 : vector<1x1xf32>
    %66 = arith.addf %59, %65 : vector<1x1xf32>
    %67 = vector.broadcast %66 : vector<1x1xf32> to vector<1x10xf32>
    %68 = arith.subf %57, %67 : vector<1x10xf32>
    %c0_68 = arith.constant 0 : index
    %c0_69 = arith.constant 0 : index
    %69 = vector.load %arg14[%c0_68, %c0_69] : memref<2x10xf32, #tpu.memory_space<vmem>>, vector<1x10xf32>
    tpu.vector_store %arg14[%c0_68, %c0_69], %68 {strides = array<i32>} : memref<2x10xf32, #tpu.memory_space<vmem>>, vector<1x10xf32>,
    %c1_70 = arith.constant 1 : index
    %c0_71 = arith.constant 0 : index
    %c0_72 = arith.constant 0 : index
    %70 = vector.load %arg1[%c1_70, %c0_71, %c0_72] : memref<2x28x28xf32, #tpu.memory_space<vmem>>, vector<1x24x28xf32>
    %71 = vector.shape_cast %70 : vector<1x24x28xf32> to vector<24x28xf32>
    %c1_73 = arith.constant 1 : index
    %c1_74 = arith.constant 1 : index
    %c0_75 = arith.constant 0 : index
    %72 = vector.load %arg1[%c1_73, %c1_74, %c0_75] : memref<2x28x28xf32, #tpu.memory_space<vmem>>, vector<1x24x28xf32>
    %73 = vector.shape_cast %72 : vector<1x24x28xf32> to vector<24x28xf32>
    %c1_76 = arith.constant 1 : index
    %c2_77 = arith.constant 2 : index
    %c0_78 = arith.constant 0 : index
    %74 = vector.load %arg1[%c1_76, %c2_77, %c0_78] : memref<2x28x28xf32, #tpu.memory_space<vmem>>, vector<1x24x28xf32>
    %75 = vector.shape_cast %74 : vector<1x24x28xf32> to vector<24x28xf32>
    %c1_79 = arith.constant 1 : index
    %c3_80 = arith.constant 3 : index
    %c0_81 = arith.constant 0 : index
    %76 = vector.load %arg1[%c1_79, %c3_80, %c0_81] : memref<2x28x28xf32, #tpu.memory_space<vmem>>, vector<1x24x28xf32>
    %77 = vector.shape_cast %76 : vector<1x24x28xf32> to vector<24x28xf32>
    %c1_82 = arith.constant 1 : index
    %c4_83 = arith.constant 4 : index
    %c0_84 = arith.constant 0 : index
    %78 = vector.load %arg1[%c1_82, %c4_83, %c0_84] : memref<2x28x28xf32, #tpu.memory_space<vmem>>, vector<1x24x28xf32>
    %79 = vector.shape_cast %78 : vector<1x24x28xf32> to vector<24x28xf32>
    %80 = tpu.concatenate %71, %73, %75, %77, %79 in 1 : vector<24x28xf32>, vector<24x28xf32>, vector<24x28xf32>, vector<24x28xf32>, vector<24x28xf32> -> vector<24x140xf32>
    %c0_85 = arith.constant 0 : index
    %c0_86 = arith.constant 0 : index
    %81 = vector.load %arg2[%c0_85, %c0_86] : memref<140x120xf32, #tpu.memory_space<vmem>>, vector<140x120xf32>
    %cst_87 = arith.constant dense<0.000000e+00> : vector<24x120xf32>
    %82 = tpu.matmul %80, %81, %cst_87 {dimension_numbers = #tpu.dot_dimension_numbers<[1], [0], [0], [1], [0, 0, 1, 1], [], []>} : vector<24x140xf32>, vector<140x120xf32>, vector<24x120xf32> -> vector<24x120xf32>
    %c0_88 = arith.constant 0 : index
    %c0_89 = arith.constant 0 : index
    %83 = vector.load %arg3[%c0_88, %c0_89] : memref<140x120xf32, #tpu.memory_space<vmem>>, vector<140x120xf32>
    %cst_90 = arith.constant dense<0.000000e+00> : vector<24x120xf32>
    %84 = tpu.matmul %80, %83, %cst_90 {dimension_numbers = #tpu.dot_dimension_numbers<[1], [0], [0], [1], [0, 0, 1, 1], [], []>} : vector<24x140xf32>, vector<140x120xf32>, vector<24x120xf32> -> vector<24x120xf32>
    %85 = arith.maximumf %82, %84 : vector<24x120xf32>
    %c0_91 = arith.constant 0 : index
    %c0_92 = arith.constant 0 : index
    %86 = vector.load %arg5[%c0_91, %c0_92] : memref<12x24xf32, #tpu.memory_space<vmem>>, vector<12x24xf32>
    %cst_93 = arith.constant dense<0.000000e+00> : vector<12x120xf32>
    %87 = tpu.matmul %86, %85, %cst_93 {dimension_numbers = #tpu.dot_dimension_numbers<[1], [0], [0], [1], [0, 0, 1, 1], [], []>} : vector<12x24xf32>, vector<24x120xf32>, vector<12x120xf32> -> vector<12x120xf32>
    %c0_94 = arith.constant 0 : index
    %c0_95 = arith.constant 0 : index
    %88 = vector.load %arg6[%c0_94, %c0_95] : memref<12x24xf32, #tpu.memory_space<vmem>>, vector<12x24xf32>
    %cst_96 = arith.constant dense<0.000000e+00> : vector<12x120xf32>
    %89 = tpu.matmul %88, %85, %cst_96 {dimension_numbers = #tpu.dot_dimension_numbers<[1], [0], [0], [1], [0, 0, 1, 1], [], []>} : vector<12x24xf32>, vector<24x120xf32>, vector<12x120xf32> -> vector<12x120xf32>
    %90 = arith.maximumf %87, %89 : vector<12x120xf32>
    %c0_97 = arith.constant 0 : index
    %c0_98 = arith.constant 0 : index
    %91 = vector.load %arg4[%c0_97, %c0_98] : memref<1x120xf32, #tpu.memory_space<vmem>>, vector<1x120xf32>
    %92 = vector.broadcast %91 : vector<1x120xf32> to vector<12x120xf32>
    %93 = arith.addf %90, %92 : vector<12x120xf32>
    %cst_99 = arith.constant 0.000000e+00 : f32
    %94 = vector.broadcast %cst_99 : f32 to vector<12x120xf32>
    %95 = arith.maximumf %93, %94 : vector<12x120xf32>
    %c0_100 = arith.constant 0 : index
    %c0_101 = arith.constant 0 : index
    %96 = vector.load %arg15[%c0_100, %c0_101] : memref<12x120xf32, #tpu.memory_space<vmem>>, vector<12x120xf32>
    tpu.vector_store %arg15[%c0_100, %c0_101], %95 {strides = array<i32>} : memref<12x120xf32, #tpu.memory_space<vmem>>, vector<12x120xf32>,
    %c0_102 = arith.constant 0 : index
    %c0_103 = arith.constant 0 : index
    %97 = vector.load %arg15[%c0_102, %c0_103] : memref<12x120xf32, #tpu.memory_space<vmem>>, vector<8x120xf32>
    %c1_104 = arith.constant 1 : index
    %c0_105 = arith.constant 0 : index
    %98 = vector.load %arg15[%c1_104, %c0_105] : memref<12x120xf32, #tpu.memory_space<vmem>>, vector<8x120xf32>
    %c2_106 = arith.constant 2 : index
    %c0_107 = arith.constant 0 : index
    %99 = vector.load %arg15[%c2_106, %c0_107] : memref<12x120xf32, #tpu.memory_space<vmem>>, vector<8x120xf32>
    %c3_108 = arith.constant 3 : index
    %c0_109 = arith.constant 0 : index
    %100 = vector.load %arg15[%c3_108, %c0_109] : memref<12x120xf32, #tpu.memory_space<vmem>>, vector<8x120xf32>
    %c4_110 = arith.constant 4 : index
    %c0_111 = arith.constant 0 : index
    %101 = vector.load %arg15[%c4_110, %c0_111] : memref<12x120xf32, #tpu.memory_space<vmem>>, vector<8x120xf32>
    %102 = tpu.concatenate %97, %98, %99, %100, %101 in 1 : vector<8x120xf32>, vector<8x120xf32>, vector<8x120xf32>, vector<8x120xf32>, vector<8x120xf32> -> vector<8x600xf32>
    %c0_112 = arith.constant 0 : index
    %c0_113 = arith.constant 0 : index
    %103 = vector.load %arg7[%c0_112, %c0_113] : memref<600x80xf32, #tpu.memory_space<vmem>>, vector<600x80xf32>
    %cst_114 = arith.constant dense<0.000000e+00> : vector<8x80xf32>
    %104 = tpu.matmul %102, %103, %cst_114 {dimension_numbers = #tpu.dot_dimension_numbers<[1], [0], [0], [1], [0, 0, 1, 1], [], []>} : vector<8x600xf32>, vector<600x80xf32>, vector<8x80xf32> -> vector<8x80xf32>
    %c0_115 = arith.constant 0 : index
    %c0_116 = arith.constant 0 : index
    %105 = vector.load %arg8[%c0_115, %c0_116] : memref<600x80xf32, #tpu.memory_space<vmem>>, vector<600x80xf32>
    %cst_117 = arith.constant dense<0.000000e+00> : vector<8x80xf32>
    %106 = tpu.matmul %102, %105, %cst_117 {dimension_numbers = #tpu.dot_dimension_numbers<[1], [0], [0], [1], [0, 0, 1, 1], [], []>} : vector<8x600xf32>, vector<600x80xf32>, vector<8x80xf32> -> vector<8x80xf32>
    %107 = arith.maximumf %104, %106 : vector<8x80xf32>
    %c0_118 = arith.constant 0 : index
    %c0_119 = arith.constant 0 : index
    %108 = vector.load %arg10[%c0_118, %c0_119] : memref<4x8xf32, #tpu.memory_space<vmem>>, vector<4x8xf32>
    %cst_120 = arith.constant dense<0.000000e+00> : vector<4x80xf32>
    %109 = tpu.matmul %108, %107, %cst_120 {dimension_numbers = #tpu.dot_dimension_numbers<[1], [0], [0], [1], [0, 0, 1, 1], [], []>} : vector<4x8xf32>, vector<8x80xf32>, vector<4x80xf32> -> vector<4x80xf32>
    %c0_121 = arith.constant 0 : index
    %c0_122 = arith.constant 0 : index
    %110 = vector.load %arg11[%c0_121, %c0_122] : memref<4x8xf32, #tpu.memory_space<vmem>>, vector<4x8xf32>
    %cst_123 = arith.constant dense<0.000000e+00> : vector<4x80xf32>
    %111 = tpu.matmul %110, %107, %cst_123 {dimension_numbers = #tpu.dot_dimension_numbers<[1], [0], [0], [1], [0, 0, 1, 1], [], []>} : vector<4x8xf32>, vector<8x80xf32>, vector<4x80xf32> -> vector<4x80xf32>
    %112 = arith.maximumf %109, %111 : vector<4x80xf32>
    %c0_124 = arith.constant 0 : index
    %c0_125 = arith.constant 0 : index
    %113 = vector.load %arg9[%c0_124, %c0_125] : memref<1x80xf32, #tpu.memory_space<vmem>>, vector<1x80xf32>
    %114 = vector.broadcast %113 : vector<1x80xf32> to vector<4x80xf32>
    %115 = arith.addf %112, %114 : vector<4x80xf32>
    %cst_126 = arith.constant 0.000000e+00 : f32
    %116 = vector.broadcast %cst_126 : f32 to vector<4x80xf32>
    %117 = arith.maximumf %115, %116 : vector<4x80xf32>
    %c0_127 = arith.constant 0 : index
    %c0_128 = arith.constant 0 : index
    %118 = vector.load %arg16[%c0_127, %c0_128] : memref<4x80xf32, #tpu.memory_space<vmem>>, vector<4x80xf32>
    tpu.vector_store %arg16[%c0_127, %c0_128], %117 {strides = array<i32>} : memref<4x80xf32, #tpu.memory_space<vmem>>, vector<4x80xf32>,
    %c0_129 = arith.constant 0 : index
    %c0_130 = arith.constant 0 : index
    %119 = vector.load %arg16[%c0_129, %c0_130] : memref<4x80xf32, #tpu.memory_space<vmem>>, vector<1x80xf32>
    %c1_131 = arith.constant 1 : index
    %c0_132 = arith.constant 0 : index
    %120 = vector.load %arg16[%c1_131, %c0_132] : memref<4x80xf32, #tpu.memory_space<vmem>>, vector<1x80xf32>
    %c2_133 = arith.constant 2 : index
    %c0_134 = arith.constant 0 : index
    %121 = vector.load %arg16[%c2_133, %c0_134] : memref<4x80xf32, #tpu.memory_space<vmem>>, vector<1x80xf32>
    %c3_135 = arith.constant 3 : index
    %c0_136 = arith.constant 0 : index
    %122 = vector.load %arg16[%c3_135, %c0_136] : memref<4x80xf32, #tpu.memory_space<vmem>>, vector<1x80xf32>
    %123 = tpu.concatenate %119, %120, %121, %122 in 1 : vector<1x80xf32>, vector<1x80xf32>, vector<1x80xf32>, vector<1x80xf32> -> vector<1x320xf32>
    %c0_137 = arith.constant 0 : index
    %c0_138 = arith.constant 0 : index
    %124 = vector.load %arg12[%c0_137, %c0_138] : memref<320x10xf32, #tpu.memory_space<vmem>>, vector<320x10xf32>
    %cst_139 = arith.constant dense<0.000000e+00> : vector<1x10xf32>
    %125 = tpu.matmul %123, %124, %cst_139 {dimension_numbers = #tpu.dot_dimension_numbers<[1], [0], [0], [1], [0, 0, 1, 1], [], []>} : vector<1x320xf32>, vector<320x10xf32>, vector<1x10xf32> -> vector<1x10xf32>
    %c0_140 = arith.constant 0 : index
    %c0_141 = arith.constant 0 : index
    %126 = vector.load %arg13[%c0_140, %c0_141] : memref<1x10xf32, #tpu.memory_space<vmem>>, vector<1x10xf32>
    %127 = arith.addf %125, %126 : vector<1x10xf32>
    %cst_142 = arith.constant dense<0xFF800000> : vector<1xf32>
    %128 = vector.multi_reduction <maximumf>, %127, %cst_142 [1] : vector<1x10xf32> to vector<1xf32>
    %129 = vector.shape_cast %128 : vector<1xf32> to vector<1x1xf32>
    %130 = vector.broadcast %129 : vector<1x1xf32> to vector<1x10xf32>
    %131 = arith.subf %127, %130 : vector<1x10xf32>
    %132 = math.exp %131 : vector<1x10xf32>
    %cst_143 = arith.constant dense<0.000000e+00> : vector<1xf32>
    %133 = vector.multi_reduction <add>, %132, %cst_143 [1] : vector<1x10xf32> to vector<1xf32>
    %134 = vector.shape_cast %133 : vector<1xf32> to vector<1x1xf32>
    %135 = math.log %134 : vector<1x1xf32>
    %136 = arith.addf %129, %135 : vector<1x1xf32>
    %137 = vector.broadcast %136 : vector<1x1xf32> to vector<1x10xf32>
    %138 = arith.subf %127, %137 : vector<1x10xf32>
    %c1_144 = arith.constant 1 : index
    %c0_145 = arith.constant 0 : index
    %139 = vector.load %arg14[%c1_144, %c0_145] : memref<2x10xf32, #tpu.memory_space<vmem>>, vector<1x10xf32>
    tpu.vector_store %arg14[%c1_144, %c0_145], %138 {strides = array<i32>} : memref<2x10xf32, #tpu.memory_space<vmem>>, vector<1x10xf32>,
    return
  }
  func.func @transform_0(%arg0: i32) -> (i32, i32, i32) {
    %c0_i32 = arith.constant 0 : i32
    %c0_i32_0 = arith.constant 0 : i32
    %c0_i32_1 = arith.constant 0 : i32
    return %arg0, %c0_i32, %c0_i32_0 : i32, i32, i32
  }
  func.func @transform_1(%arg0: i32) -> (i32, i32) {
    %c0_i32 = arith.constant 0 : i32
    %c0_i32_0 = arith.constant 0 : i32
    %c0_i32_1 = arith.constant 0 : i32
    return %c0_i32, %c0_i32_0 : i32, i32
  }
  func.func @transform_2(%arg0: i32) -> (i32, i32) {
    %c0_i32 = arith.constant 0 : i32
    %c0_i32_0 = arith.constant 0 : i32
    %c0_i32_1 = arith.constant 0 : i32
    return %c0_i32, %c0_i32_0 : i32, i32
  }
  func.func @transform_3(%arg0: i32) -> (i32, i32) {
    %c0_i32 = arith.constant 0 : i32
    %c0_i32_0 = arith.constant 0 : i32
    %c0_i32_1 = arith.constant 0 : i32
    return %c0_i32, %c0_i32_0 : i32, i32
  }
  func.func @transform_4(%arg0: i32) -> (i32, i32) {
    %c0_i32 = arith.constant 0 : i32
    %c0_i32_0 = arith.constant 0 : i32
    %c0_i32_1 = arith.constant 0 : i32
    return %c0_i32, %c0_i32_0 : i32, i32
  }
  func.func @transform_5(%arg0: i32) -> (i32, i32) {
    %c0_i32 = arith.constant 0 : i32
    %c0_i32_0 = arith.constant 0 : i32
    %c0_i32_1 = arith.constant 0 : i32
    return %c0_i32, %c0_i32_0 : i32, i32
  }
  func.func @transform_6(%arg0: i32) -> (i32, i32) {
    %c0_i32 = arith.constant 0 : i32
    %c0_i32_0 = arith.constant 0 : i32
    %c0_i32_1 = arith.constant 0 : i32
    return %c0_i32, %c0_i32_0 : i32, i32
  }
  func.func @transform_7(%arg0: i32) -> (i32, i32) {
    %c0_i32 = arith.constant 0 : i32
    %c0_i32_0 = arith.constant 0 : i32
    %c0_i32_1 = arith.constant 0 : i32
    return %c0_i32, %c0_i32_0 : i32, i32
  }
  func.func @transform_8(%arg0: i32) -> (i32, i32) {
    %c0_i32 = arith.constant 0 : i32
    %c0_i32_0 = arith.constant 0 : i32
    %c0_i32_1 = arith.constant 0 : i32
    return %c0_i32, %c0_i32_0 : i32, i32
  }
  func.func @transform_9(%arg0: i32) -> (i32, i32) {
    %c0_i32 = arith.constant 0 : i32
    %c0_i32_0 = arith.constant 0 : i32
    %c0_i32_1 = arith.constant 0 : i32
    return %c0_i32, %c0_i32_0 : i32, i32
  }
  func.func @transform_10(%arg0: i32) -> (i32, i32) {
    %c0_i32 = arith.constant 0 : i32
    %c0_i32_0 = arith.constant 0 : i32
    %c0_i32_1 = arith.constant 0 : i32
    return %c0_i32, %c0_i32_0 : i32, i32
  }
  func.func @transform_11(%arg0: i32) -> (i32, i32) {
    %c0_i32 = arith.constant 0 : i32
    %c0_i32_0 = arith.constant 0 : i32
    %c0_i32_1 = arith.constant 0 : i32
    return %c0_i32, %c0_i32_0 : i32, i32
  }
  func.func @transform_12(%arg0: i32) -> (i32, i32) {
    %c0_i32 = arith.constant 0 : i32
    %c0_i32_0 = arith.constant 0 : i32
    %c0_i32_1 = arith.constant 0 : i32
    return %c0_i32, %c0_i32_0 : i32, i32
  }
  func.func @transform_13(%arg0: i32) -> (i32, i32) {
    %c0_i32 = arith.constant 0 : i32
    %c0_i32_0 = arith.constant 0 : i32
    return %arg0, %c0_i32 : i32, i32
  }
}

</mosaic_0001>

<llo_original>
// kernel: tile.13
$region0: #{tile.13}
  #allocation0 [shape = 's32[1]{0}', space=sflag, size = 0x4, scoped, tag = 'scoped memory for tile.13']
  %s0 = inlined_call_operand.vmem [shape: f32[10], index: 0, kind: input, shape index: {}]
  %s1 = inlined_call_operand.vmem [shape: f32[12,10], index: 1, kind: output, shape index: {}]
  // Predicated region
  $region2: #{tile.13} parent=0 // pred_check
    _
  $region3: #{tile.13} parent=0 // pred_check_branch
    %3 = sbr.rel (0) target = $region5
  $region4: #{tile.13} parent=0 // pred_region
    _
  $region5: #{tile.13} parent=0 // pred_fallthru
    _
  %v4 = vld [vmem:[%s0] ss:$0 sm:$0xff]
  %5 = vst [vmem:[%s1] sm:$0xff] %v4
  %s6 = scalar_lea.vmem %s1, 8
  %7 = vst [vmem:[%s6] sm:$0xff] %v4

// kernel: tile.14
$region0: #{tile.14}
  %s0 = inlined_call_operand.vmem [shape: f32[12,10], index: 0, kind: input, shape index: {}]
  %s1 = inlined_call_operand.vmem [shape: f32[1,120], index: 1, kind: output, shape index: {}]
  $region1: #{tile.14} parent=0
    #allocation0 [shape = 'u8[4096]{0}', space=vmem, size = 0x1000, scoped, tag = 'scoped mem for output reshape']
    %v2 = vld [vmem:[%s0] sm:$0x1]
    %vm3 = vcmask 80896
    %4 = vst.msk [vmem:[#allocation0] sm:$0x1] %vm3, %v2
    %s5 = scalar_lea.vmem %s0, 11
    %v6 = vld [vmem:[%s5] sm:$0x1]
    %7 = vrot.lane.b32.xlu0 %v6, 110
    %v8 = vpop.permute.xlu0 %7
    %vm9 = vcmask 982896
    %10 = vst.msk [vmem:[#allocation0] sm:$0x1] %vm9, %v8
    %s11 = scalar_lea.vmem %s0, 10
    %v12 = vld [vmem:[%s11] sm:$0x1]
    %13 = vrot.lane.b32.xlu0 %v12, 100
    %v14 = vpop.permute.xlu0 %13
    %vm15 = vcmask 900896
    %16 = vst.msk [vmem:[#allocation0] sm:$0x1] %vm15, %v14
    %s17 = scalar_lea.vmem %s0, 9
    %v18 = vld [vmem:[%s17] sm:$0x1]
    %19 = vrot.lane.b32.xlu0 %v18, 90
    %v20 = vpop.permute.xlu0 %19
    %vm21 = vcmask 818896
    %22 = vst.msk [vmem:[#allocation0] sm:$0x1] %vm21, %v20
    %s23 = scalar_lea.vmem %s0, 8
    %v24 = vld [vmem:[%s23] sm:$0x1]
    %25 = vrot.lane.b32.xlu0 %v24, 80
    %v26 = vpop.permute.xlu0 %25
    %vm27 = vcmask 736896
    %28 = vst.msk [vmem:[#allocation0] sm:$0x1] %vm27, %v26
    %s29 = scalar_lea.vmem %s0, 7
    %v30 = vld [vmem:[%s29] sm:$0x1]
    %31 = vrot.lane.b32.xlu0 %v30, 70
    %v32 = vpop.permute.xlu0 %31
    %vm33 = vcmask 654896
    %34 = vst.msk [vmem:[#allocation0] sm:$0x1] %vm33, %v32
    %s35 = scalar_lea.vmem %s0, 6
    %v36 = vld [vmem:[%s35] sm:$0x1]
    %37 = vrot.lane.b32.xlu0 %v36, 60
    %v38 = vpop.permute.xlu0 %37
    %vm39 = vcmask 572896
    %40 = vst.msk [vmem:[#allocation0] sm:$0x1] %vm39, %v38
    %s41 = scalar_lea.vmem %s0, 5
    %v42 = vld [vmem:[%s41] sm:$0x1]
    %43 = vrot.lane.b32.xlu0 %v42, 50
    %v44 = vpop.permute.xlu0 %43
    %vm45 = vcmask 490896
    %46 = vst.msk [vmem:[#allocation0] sm:$0x1] %vm45, %v44
    %s47 = scalar_lea.vmem %s0, 4
    %v48 = vld [vmem:[%s47] sm:$0x1]
    %49 = vrot.lane.b32.xlu0 %v48, 40
    %v50 = vpop.permute.xlu0 %49
    %vm51 = vcmask 408896
    %52 = vst.msk [vmem:[#allocation0] sm:$0x1] %vm51, %v50
    %s53 = scalar_lea.vmem %s0, 3
    %v54 = vld [vmem:[%s53] sm:$0x1]
    %55 = vrot.lane.b32.xlu0 %v54, 30
    %v56 = vpop.permute.xlu0 %55
    %vm57 = vcmask 326896
    %58 = vst.msk [vmem:[#allocation0] sm:$0x1] %vm57, %v56
    %s59 = scalar_lea.vmem %s0, 2
    %v60 = vld [vmem:[%s59] sm:$0x1]
    %61 = vrot.lane.b32.xlu0 %v60, 20
    %v62 = vpop.permute.xlu0 %61
    %vm63 = vcmask 244896
    %64 = vst.msk [vmem:[#allocation0] sm:$0x1] %vm63, %v62
    %s65 = scalar_lea.vmem %s0, 1
    %v66 = vld [vmem:[%s65] sm:$0x1]
    %67 = vrot.lane.b32.xlu0 %v66, 10
    %v68 = vpop.permute.xlu0 %67
    %vm69 = vcmask 162896
    %70 = vst.msk [vmem:[#allocation0] sm:$0x1] %vm69, %v68
    %s72 = ssub.s32 2, 1
    %v73 = vld [vmem:[#allocation0] sm:%s72]
    %s75 = ssub.s32 2, 1
    %76 = vst [vmem:[%s1] sm:%s75] %v73

// kernel: tile.18
$region0: #{tile.18}
  #allocation0 [shape = 's32[1]{0}', space=sflag, size = 0x4, scoped, tag = 'scoped memory for tile.18']
  %s0 = inlined_call_operand.vmem [shape: f32[20], index: 0, kind: input, shape index: {}]
  %s1 = inlined_call_operand.vmem [shape: f32[4,20], index: 1, kind: output, shape index: {}]
  // Predicated region
  $region2: #{tile.18} parent=0 // pred_check
    _
  $region3: #{tile.18} parent=0 // pred_check_branch
    %3 = sbr.rel (0) target = $region5
  $region4: #{tile.18} parent=0 // pred_region
    _
  $region5: #{tile.18} parent=0 // pred_fallthru
    _
  %v4 = vld [vmem:[%s0] ss:$0 sm:$0xff]
  %5 = vst [vmem:[%s1] sm:$0xf] %v4

// kernel: tile.19
$region0: #{tile.19}
  %s0 = inlined_call_operand.vmem [shape: f32[4,20], index: 0, kind: input, shape index: {}]
  %s1 = inlined_call_operand.vmem [shape: f32[1,80], index: 1, kind: output, shape index: {}]
  $region1: #{tile.19} parent=0
    #allocation0 [shape = 'u8[4096]{0}', space=vmem, size = 0x1000, scoped, tag = 'scoped mem for output reshape']
    #allocation1 [shape = 'u8[4096]{0}', space=vmem, size = 0x1000, scoped, tag = 'scoped mem for input reshape']
    %s3 = ssub.s32 16, 1
    %v4 = vld [vmem:[%s0] sm:%s3]
    %5 = vst [vmem:[#allocation1] sm:%s3] %v4
    %v6 = vld [vmem:[#allocation1] sm:$0x1]
    %vm7 = vcmask 162816
    %8 = vst.msk [vmem:[#allocation0] sm:$0x1] %vm7, %v6
    %s9 = scalar_lea.vmem [#allocation1], 3
    %v10 = vld [vmem:[%s9] sm:$0x1]
    %11 = vrot.lane.b32.xlu0 %v10, 60
    %v12 = vpop.permute.xlu0 %11
    %vm13 = vcmask 654816
    %14 = vst.msk [vmem:[#allocation0] sm:$0x1] %vm13, %v12
    %s15 = scalar_lea.vmem [#allocation1], 2
    %v16 = vld [vmem:[%s15] sm:$0x1]
    %17 = vrot.lane.b32.xlu0 %v16, 40
    %v18 = vpop.permute.xlu0 %17
    %vm19 = vcmask 490816
    %20 = vst.msk [vmem:[#allocation0] sm:$0x1] %vm19, %v18
    %s21 = scalar_lea.vmem [#allocation1], 1
    %v22 = vld [vmem:[%s21] sm:$0x1]
    %23 = vrot.lane.b32.xlu0 %v22, 20
    %v24 = vpop.permute.xlu0 %23
    %vm25 = vcmask 326816
    %26 = vst.msk [vmem:[#allocation0] sm:$0x1] %vm25, %v24
    %s28 = ssub.s32 2, 1
    %v29 = vld [vmem:[#allocation0] sm:%s28]
    %s31 = ssub.s32 2, 1
    %32 = vst [vmem:[%s1] sm:%s31] %v29

// kernel: net_forward.1
$region0: #{net_forward.1}
  #allocation0 [shape = 'u32[]', space=smem, size = 0x4, offset = 0x4, fixed_abs, tag = 'smem constant byte address 0x4 - core index']
  #allocation1 [shape = 'u32[72,128]{1,0:T(1,128)}', space=vmem, size = 0x9000, scoped, tag = 'internal scratch']
  #allocation2 [shape = 'f32[12,120]{1,0:T(8,128)}', space=vmem, size = 0x2000, scoped, tag = 'scratch operand']
  #allocation3 [shape = 'f32[4,80]{1,0:T(4,128)}', space=vmem, size = 0x800, scoped, tag = 'scratch operand']
  %s0 = inlined_call_operand.vmem [shape: f32[2,28,28], index: 0, kind: input, shape index: {}]
  %s1 = inlined_call_operand.vmem [shape: f32[140,120], index: 1, kind: input, shape index: {}]
  %s2 = inlined_call_operand.vmem [shape: f32[140,120], index: 2, kind: input, shape index: {}]
  %s3 = inlined_call_operand.vmem [shape: f32[1,120], index: 3, kind: input, shape index: {}]
  %s4 = inlined_call_operand.vmem [shape: f32[12,24], index: 4, kind: input, shape index: {}]
  %s5 = inlined_call_operand.vmem [shape: f32[12,24], index: 5, kind: input, shape index: {}]
  %s6 = inlined_call_operand.vmem [shape: f32[600,80], index: 6, kind: input, shape index: {}]
  %s7 = inlined_call_operand.vmem [shape: f32[600,80], index: 7, kind: input, shape index: {}]
  %s8 = inlined_call_operand.vmem [shape: f32[1,80], index: 8, kind: input, shape index: {}]
  %s9 = inlined_call_operand.vmem [shape: f32[4,8], index: 9, kind: input, shape index: {}]
  %s10 = inlined_call_operand.vmem [shape: f32[4,8], index: 10, kind: input, shape index: {}]
  %s11 = inlined_call_operand.vmem [shape: f32[320,10], index: 11, kind: input, shape index: {}]
  %s12 = inlined_call_operand.vmem [shape: f32[1,10], index: 12, kind: input, shape index: {}]
  %s13 = inlined_call_operand.hbm [shape: f32[2,10], index: 13, kind: output, shape index: {}]
  %s14 = sld [smem:[#allocation0]]
  $region62: #{net_forward.1} parent=0
    _
  %s16 = ssub.s32 1, %s14
  %s17 = scalar_select 0, %s16, %s14
  $region1: #{net_forward.1} parent=0
    #allocation4 [shape = 'u8[1024]{0}', space=vmem, size = 0x400, scoped, tag = 'output window, operand 0, single buffered']
    #allocation5 [shape = 's32[1]{0}', space=sflag, size = 0x4, scoped, tag = 'scoped memory for net_forward.1']
    %18 = vsyncpa [#allocation5], 0
    // Predicated region
    $region2: #{net_forward.1} parent=1 // pred_check
      _
    $region3: #{net_forward.1} parent=1 // pred_check_branch
      %20 = sbr.rel (0) target = $region5
    $region4: #{net_forward.1} parent=1 // pred_region
      _
    $region5: #{net_forward.1} parent=1 // pred_fallthru
      _
    // Predicated region
    $region6: #{net_forward.1} parent=1 // pred_check
      _
    $region7: #{net_forward.1} parent=1 // pred_check_branch
      %22 = sbr.rel (0) target = $region9
    $region8: #{net_forward.1} parent=1 // pred_region
      _
    $region9: #{net_forward.1} parent=1 // pred_fallthru
      _
    // Predicated region
    $region10: #{net_forward.1} parent=1 // pred_check
      _
    $region11: #{net_forward.1} parent=1 // pred_check_branch
      %24 = sbr.rel (0) target = $region13
    $region12: #{net_forward.1} parent=1 // pred_region
      _
    $region13: #{net_forward.1} parent=1 // pred_fallthru
      _
    // Predicated region
    $region14: #{net_forward.1} parent=1 // pred_check
      _
    $region15: #{net_forward.1} parent=1 // pred_check_branch
      %26 = sbr.rel (0) target = $region17
    $region16: #{net_forward.1} parent=1 // pred_region
      _
    $region17: #{net_forward.1} parent=1 // pred_fallthru
      _
    // Predicated region
    $region18: #{net_forward.1} parent=1 // pred_check
      _
    $region19: #{net_forward.1} parent=1 // pred_check_branch
      %28 = sbr.rel (0) target = $region21
    $region20: #{net_forward.1} parent=1 // pred_region
      _
    $region21: #{net_forward.1} parent=1 // pred_fallthru
      _
    // Predicated region
    $region22: #{net_forward.1} parent=1 // pred_check
      _
    $region23: #{net_forward.1} parent=1 // pred_check_branch
      %30 = sbr.rel (0) target = $region25
    $region24: #{net_forward.1} parent=1 // pred_region
      _
    $region25: #{net_forward.1} parent=1 // pred_fallthru
      _
    // Predicated region
    $region26: #{net_forward.1} parent=1 // pred_check
      _
    $region27: #{net_forward.1} parent=1 // pred_check_branch
      %32 = sbr.rel (0) target = $region29
    $region28: #{net_forward.1} parent=1 // pred_region
      _
    $region29: #{net_forward.1} parent=1 // pred_fallthru
      _
    // Predicated region
    $region30: #{net_forward.1} parent=1 // pred_check
      _
    $region31: #{net_forward.1} parent=1 // pred_check_branch
      %34 = sbr.rel (0) target = $region33
    $region32: #{net_forward.1} parent=1 // pred_region
      _
    $region33: #{net_forward.1} parent=1 // pred_fallthru
      _
    // Predicated region
    $region34: #{net_forward.1} parent=1 // pred_check
      _
    $region35: #{net_forward.1} parent=1 // pred_check_branch
      %36 = sbr.rel (0) target = $region37
    $region36: #{net_forward.1} parent=1 // pred_region
      _
    $region37: #{net_forward.1} parent=1 // pred_fallthru
      _
    // Predicated region
    $region38: #{net_forward.1} parent=1 // pred_check
      _
    $region39: #{net_forward.1} parent=1 // pred_check_branch
      %38 = sbr.rel (0) target = $region41
    $region40: #{net_forward.1} parent=1 // pred_region
      _
    $region41: #{net_forward.1} parent=1 // pred_fallthru
      _
    // Predicated region
    $region42: #{net_forward.1} parent=1 // pred_check
      _
    $region43: #{net_forward.1} parent=1 // pred_check_branch
      %40 = sbr.rel (0) target = $region45
    $region44: #{net_forward.1} parent=1 // pred_region
      _
    $region45: #{net_forward.1} parent=1 // pred_fallthru
      _
    // Predicated region
    $region46: #{net_forward.1} parent=1 // pred_check
      _
    $region47: #{net_forward.1} parent=1 // pred_check_branch
      %42 = sbr.rel (0) target = $region49
    $region48: #{net_forward.1} parent=1 // pred_region
      _
    $region49: #{net_forward.1} parent=1 // pred_fallthru
      _
    // Predicated region
    $region50: #{net_forward.1} parent=1 // pred_check
      _
    $region51: #{net_forward.1} parent=1 // pred_check_branch
      %44 = sbr.rel (0) target = $region53
    $region52: #{net_forward.1} parent=1 // pred_region
      _
    $region53: #{net_forward.1} parent=1 // pred_fallthru
      _
    %v45 = vld [vmem:[%s0] sm:$0xff]
    %v46 = vld [vmem:[%s0 + $0x8] sm:$0xff]
    %v47 = vld [vmem:[%s0 + $0x10] sm:$0xff]
    %v48 = vld [vmem:[%s0 + $0x1] sm:$0xff]
    %v49 = vld [vmem:[%s0 + $0x9] sm:$0xff]
    %v50 = vld [vmem:[%s0 + $0x11] sm:$0xff]
    %v51 = vld [vmem:[%s0 + $0x2] sm:$0xff]
    %v52 = vld [vmem:[%s0 + $0xa] sm:$0xff]
    %v53 = vld [vmem:[%s0 + $0x12] sm:$0xff]
    %v54 = vld [vmem:[%s0 + $0x3] sm:$0xff]
    %v55 = vld [vmem:[%s0 + $0xb] sm:$0xff]
    %v56 = vld [vmem:[%s0 + $0x13] sm:$0xff]
    %v57 = vld [vmem:[%s0 + $0x4] sm:$0xff]
    %v58 = vld [vmem:[%s0 + $0xc] sm:$0xff]
    %v59 = vld [vmem:[%s0 + $0x14] sm:$0xff]
    %63 = vrot.lane.b32.xlu0 %v48, 28
    %v64 = vpop.permute.xlu0 %63
    %65 = vrot.lane.b32.xlu0 %v49, 28
    %v66 = vpop.permute.xlu0 %65
    %67 = vrot.lane.b32.xlu0 %v50, 28
    %v68 = vpop.permute.xlu0 %67
    %75 = vrot.lane.b32.xlu0 %v51, 56
    %v76 = vpop.permute.xlu0 %75
    %77 = vrot.lane.b32.xlu0 %v52, 56
    %v78 = vpop.permute.xlu0 %77
    %79 = vrot.lane.b32.xlu0 %v53, 56
    %v80 = vpop.permute.xlu0 %79
    %87 = vrot.lane.b32.xlu0 %v54, 84
    %v88 = vpop.permute.xlu0 %87
    %89 = vrot.lane.b32.xlu0 %v55, 84
    %v90 = vpop.permute.xlu0 %89
    %91 = vrot.lane.b32.xlu0 %v56, 84
    %v92 = vpop.permute.xlu0 %91
    %99 = vrot.lane.b32.xlu0 %v57, 112
    %v100 = vpop.permute.xlu0 %99
    %101 = vrot.lane.b32.xlu0 %v58, 112
    %v102 = vpop.permute.xlu0 %101
    %103 = vrot.lane.b32.xlu0 %v59, 112
    %v104 = vpop.permute.xlu0 %103
    %vm108 = vcmask 228352
    %v109 = vsel %vm108, %v45, %v64
    %v110 = vsel %vm108, %v46, %v66
    %v111 = vsel %vm108, %v47, %v68
    %vm112 = vcmask 457728
    %v113 = vsel %vm112, %v109, %v76
    %v114 = vsel %vm112, %v110, %v78
    %v115 = vsel %vm112, %v111, %v80
    %vm116 = vcmask 687104
    %v117 = vsel %vm116, %v113, %v88
    %v118 = vsel %vm116, %v114, %v90
    %v119 = vsel %vm116, %v115, %v92
    %vm120 = vcmask 916480
    %v121 = vsel %vm120, %v117, %v100
    %v122 = vsel %vm120, %v118, %v102
    %v123 = vsel %vm120, %v119, %v104
    %v124 = vld [vmem:[%s1] sm:$0xff]
    %v125 = vld [vmem:[%s1 + $0x8] sm:$0xff]
    %v126 = vld [vmem:[%s1 + $0x10] sm:$0xff]
    %v127 = vld [vmem:[%s1 + $0x18] sm:$0xff]
    %v128 = vld [vmem:[%s1 + $0x20] sm:$0xff]
    %v129 = vld [vmem:[%s1 + $0x28] sm:$0xff]
    %v130 = vld [vmem:[%s1 + $0x30] sm:$0xff]
    %v131 = vld [vmem:[%s1 + $0x38] sm:$0xff]
    %v132 = vld [vmem:[%s1 + $0x40] sm:$0xff]
    %v133 = vld [vmem:[%s1 + $0x48] sm:$0xff]
    %v134 = vld [vmem:[%s1 + $0x50] sm:$0xff]
    %v135 = vld [vmem:[%s1 + $0x58] sm:$0xff]
    %v136 = vld [vmem:[%s1 + $0x60] sm:$0xff]
    %v137 = vld [vmem:[%s1 + $0x68] sm:$0xff]
    %v138 = vld [vmem:[%s1 + $0x70] sm:$0xff]
    %v139 = vld [vmem:[%s1 + $0x78] sm:$0xff]
    %v140 = vld [vmem:[%s1 + $0x80] sm:$0xff]
    %v141 = vld [vmem:[%s1 + $0x88] sm:$0xf]
    %vm142 = vcmask 97280
    %v143 = vsel %vm142, %v100, 0
    %v145 = vsel %vm142, %v102, 0
    %v147 = vsel %vm142, %v104, 0
    %vm149 = vcmask 1043456
    %v151 = vsel %vm149, %v141, 0
    %153 = vmatpush.msra.mxu0 %v139
    %154 = vmatpush.msra.mxu0 %v138
    %155 = vmatpush.msra.mxu0 %v137
    %156 = vmatpush.msra.mxu0 %v136
    %157 = vmatpush.msra.mxu0 %v135
    %158 = vmatpush.msra.mxu0 %v134
    %159 = vmatpush.msra.mxu0 %v133
    %160 = vmatpush.msra.mxu0 %v132
    %161 = vmatpush.msra.mxu0 %v131
    %162 = vmatpush.msra.mxu0 %v130
    %163 = vmatpush.msra.mxu0 %v129
    %164 = vmatpush.msra.mxu0 %v128
    %165 = vmatpush.msra.mxu0 %v127
    %166 = vmatpush.msra.mxu0 %v126
    %167 = vmatpush.msra.mxu0 %v125
    %168 = vmatpush.msra.mxu0 %v124
    %169 = vmatmul.f32.gmra.mxu0 %v121
    %v170 = vpop.f32.mrf.mxu0
    %v171 = vadd.f32 0.0, %v170
    %172 = vmatmul.f32.gmra.mxu0 %v122
    %v173 = vpop.f32.mrf.mxu0
    %v174 = vadd.f32 0.0, %v173
    %175 = vmatmul.f32.gmra.mxu0 %v123
    %v176 = vpop.f32.mrf.mxu0
    %v177 = vadd.f32 0.0, %v176
    %178 = vdwg.mxu0
    %179 = vmatpush.msra.mxu0 0.0
    %180 = vmatpush.msra.mxu0 0.0
    %181 = vmatpush.msra.mxu0 0.0
    %182 = vmatpush.msra.mxu0 0.0
    %183 = vmatpush.msra.mxu0 0.0
    %184 = vmatpush.msra.mxu0 0.0
    %185 = vmatpush.msra.mxu0 0.0
    %186 = vmatpush.msra.mxu0 0.0
    %187 = vmatpush.msra.mxu0 0.0
    %188 = vmatpush.msra.mxu0 0.0
    %189 = vmatpush.msra.mxu0 0.0
    %190 = vmatpush.msra.mxu0 0.0
    %191 = vmatpush.msra.mxu0 0.0
    %192 = vmatpush.msra.mxu0 0.0
    %193 = vmatpush.msra.mxu0 %v151
    %194 = vmatpush.msra.mxu0 %v140
    %195 = vmatmul.f32.gmra.mxu0 %v143
    %v196 = vpop.f32.mrf.mxu0
    %v197 = vadd.f32 %v171, %v196
    %198 = vmatmul.f32.gmra.mxu0 %v145
    %v199 = vpop.f32.mrf.mxu0
    %v200 = vadd.f32 %v174, %v199
    %201 = vmatmul.f32.gmra.mxu0 %v147
    %v202 = vpop.f32.mrf.mxu0
    %v203 = vadd.f32 %v177, %v202
    %204 = vdwg.mxu0
    %v205 = vld [vmem:[%s2] sm:$0xff]
    %v206 = vld [vmem:[%s2 + $0x8] sm:$0xff]
    %v207 = vld [vmem:[%s2 + $0x10] sm:$0xff]
    %v208 = vld [vmem:[%s2 + $0x18] sm:$0xff]
    %v209 = vld [vmem:[%s2 + $0x20] sm:$0xff]
    %v210 = vld [vmem:[%s2 + $0x28] sm:$0xff]
    %v211 = vld [vmem:[%s2 + $0x30] sm:$0xff]
    %v212 = vld [vmem:[%s2 + $0x38] sm:$0xff]
    %v213 = vld [vmem:[%s2 + $0x40] sm:$0xff]
    %v214 = vld [vmem:[%s2 + $0x48] sm:$0xff]
    %v215 = vld [vmem:[%s2 + $0x50] sm:$0xff]
    %v216 = vld [vmem:[%s2 + $0x58] sm:$0xff]
    %v217 = vld [vmem:[%s2 + $0x60] sm:$0xff]
    %v218 = vld [vmem:[%s2 + $0x68] sm:$0xff]
    %v219 = vld [vmem:[%s2 + $0x70] sm:$0xff]
    %v220 = vld [vmem:[%s2 + $0x78] sm:$0xff]
    %v221 = vld [vmem:[%s2 + $0x80] sm:$0xff]
    %v222 = vld [vmem:[%s2 + $0x88] sm:$0xf]
    %v224 = vsel %vm149, %v222, 0
    %226 = vmatpush.msra.mxu0 %v220
    %227 = vmatpush.msra.mxu0 %v219
    %228 = vmatpush.msra.mxu0 %v218
    %229 = vmatpush.msra.mxu0 %v217
    %230 = vmatpush.msra.mxu0 %v216
    %231 = vmatpush.msra.mxu0 %v215
    %232 = vmatpush.msra.mxu0 %v214
    %233 = vmatpush.msra.mxu0 %v213
    %234 = vmatpush.msra.mxu0 %v212
    %235 = vmatpush.msra.mxu0 %v211
    %236 = vmatpush.msra.mxu0 %v210
    %237 = vmatpush.msra.mxu0 %v209
    %238 = vmatpush.msra.mxu0 %v208
    %239 = vmatpush.msra.mxu0 %v207
    %240 = vmatpush.msra.mxu0 %v206
    %241 = vmatpush.msra.mxu0 %v205
    %242 = vmatmul.f32.gmra.mxu0 %v121
    %v243 = vpop.f32.mrf.mxu0
    %v244 = vadd.f32 0.0, %v243
    %245 = vmatmul.f32.gmra.mxu0 %v122
    %v246 = vpop.f32.mrf.mxu0
    %v247 = vadd.f32 0.0, %v246
    %248 = vmatmul.f32.gmra.mxu0 %v123
    %v249 = vpop.f32.mrf.mxu0
    %v250 = vadd.f32 0.0, %v249
    %251 = vdwg.mxu0
    %252 = vmatpush.msra.mxu0 0.0
    %253 = vmatpush.msra.mxu0 0.0
    %254 = vmatpush.msra.mxu0 0.0
    %255 = vmatpush.msra.mxu0 0.0
    %256 = vmatpush.msra.mxu0 0.0
    %257 = vmatpush.msra.mxu0 0.0
    %258 = vmatpush.msra.mxu0 0.0
    %259 = vmatpush.msra.mxu0 0.0
    %260 = vmatpush.msra.mxu0 0.0
    %261 = vmatpush.msra.mxu0 0.0
    %262 = vmatpush.msra.mxu0 0.0
    %263 = vmatpush.msra.mxu0 0.0
    %264 = vmatpush.msra.mxu0 0.0
    %265 = vmatpush.msra.mxu0 0.0
    %266 = vmatpush.msra.mxu0 %v224
    %267 = vmatpush.msra.mxu0 %v221
    %268 = vmatmul.f32.gmra.mxu0 %v143
    %v269 = vpop.f32.mrf.mxu0
    %v270 = vadd.f32 %v244, %v269
    %271 = vmatmul.f32.gmra.mxu0 %v145
    %v272 = vpop.f32.mrf.mxu0
    %v273 = vadd.f32 %v247, %v272
    %274 = vmatmul.f32.gmra.mxu0 %v147
    %v275 = vpop.f32.mrf.mxu0
    %v276 = vadd.f32 %v250, %v275
    %277 = vdwg.mxu0
    %v278 = vmax.f32 %v197, %v270
    %v279 = vmax.f32 %v200, %v273
    %v280 = vmax.f32 %v203, %v276
    %v281 = vld [vmem:[%s4] sm:$0xff]
    %v282 = vld [vmem:[%s4 + $0x8] sm:$0xf]
    %vm283 = vcmask 195584
    %v285 = vsel %vm283, %v281, 0
    %v288 = vsel %vm283, %v282, 0
    %290 = vmatpush.msra.mxu0 0.0
    %291 = vmatpush.msra.mxu0 0.0
    %292 = vmatpush.msra.mxu0 0.0
    %293 = vmatpush.msra.mxu0 0.0
    %294 = vmatpush.msra.mxu0 0.0
    %295 = vmatpush.msra.mxu0 0.0
    %296 = vmatpush.msra.mxu0 0.0
    %297 = vmatpush.msra.mxu0 0.0
    %298 = vmatpush.msra.mxu0 0.0
    %299 = vmatpush.msra.mxu0 0.0
    %300 = vmatpush.msra.mxu0 0.0
    %301 = vmatpush.msra.mxu0 0.0
    %302 = vmatpush.msra.mxu0 0.0
    %303 = vmatpush.msra.mxu0 %v280
    %304 = vmatpush.msra.mxu0 %v279
    %305 = vmatpush.msra.mxu0 %v278
    %306 = vmatmul.f32.gmra.mxu0 %v285
    %v307 = vpop.f32.mrf.mxu0
    %v308 = vadd.f32 0.0, %v307
    %309 = vmatmul.f32.gmra.mxu0 %v288
    %v310 = vpop.f32.mrf.mxu0
    %v311 = vadd.f32 0.0, %v310
    %312 = vdwg.mxu0
    %v313 = vld [vmem:[%s5] sm:$0xff]
    %v314 = vld [vmem:[%s5 + $0x8] sm:$0xf]
    %v316 = vsel %vm283, %v313, 0
    %v319 = vsel %vm283, %v314, 0
    %321 = vmatpush.msra.mxu0 0.0
    %322 = vmatpush.msra.mxu0 0.0
    %323 = vmatpush.msra.mxu0 0.0
    %324 = vmatpush.msra.mxu0 0.0
    %325 = vmatpush.msra.mxu0 0.0
    %326 = vmatpush.msra.mxu0 0.0
    %327 = vmatpush.msra.mxu0 0.0
    %328 = vmatpush.msra.mxu0 0.0
    %329 = vmatpush.msra.mxu0 0.0
    %330 = vmatpush.msra.mxu0 0.0
    %331 = vmatpush.msra.mxu0 0.0
    %332 = vmatpush.msra.mxu0 0.0
    %333 = vmatpush.msra.mxu0 0.0
    %334 = vmatpush.msra.mxu0 %v280
    %335 = vmatpush.msra.mxu0 %v279
    %336 = vmatpush.msra.mxu0 %v278
    %337 = vmatmul.f32.gmra.mxu0 %v316
    %v338 = vpop.f32.mrf.mxu0
    %v339 = vadd.f32 0.0, %v338
    %340 = vmatmul.f32.gmra.mxu0 %v319
    %v341 = vpop.f32.mrf.mxu0
    %v342 = vadd.f32 0.0, %v341
    %343 = vdwg.mxu0
    %v344 = vmax.f32 %v308, %v339
    %v345 = vmax.f32 %v311, %v342
    %v346 = vld [vmem:[%s3] sm:$0x1]
    %v348 = vperm.slane %v346, 0
    %v350 = vadd.f32 %v344, %v348
    %v351 = vadd.f32 %v345, %v348
    %v352 = vmax.f32 %v350, 0.0
    %v353 = vmax.f32 %v351, 0.0
    %vm354 = vcmask 982016
    %355 = vst.msk [vmem:[#allocation2] sm:$0xff] %vm354, %v352
    %vm356 = vcmask 977920
    %357 = vst.msk [vmem:[#allocation2 + $0x8] sm:$0xf] %vm356, %v353
    %v358 = vld [vmem:[#allocation2] sm:$0xff]
    %v359 = vld [vmem:[#allocation2 + $0x1] sm:$0xff]
    %v360 = vld [vmem:[#allocation2 + $0x2] sm:$0xff]
    %v361 = vld [vmem:[#allocation2 + $0x3] sm:$0xff]
    %v362 = vld [vmem:[#allocation2 + $0x4] sm:$0xff]
    %364 = vrot.lane.b32.xlu0 %v359, 120
    %v365 = vpop.permute.xlu0 %364
    %368 = vrot.lane.b32.xlu0 %v360, 112
    %v369 = vpop.permute.xlu0 %368
    %372 = vrot.lane.b32.xlu0 %v361, 104
    %v373 = vpop.permute.xlu0 %372
    %376 = vrot.lane.b32.xlu0 %v362, 96
    %v377 = vpop.permute.xlu0 %376
    %v379 = vsel %vm354, %v358, %v365
    %v380 = vsel %vm120, %v365, %v369
    %vm381 = vcmask 850944
    %v382 = vsel %vm381, %v369, %v373
    %vm383 = vcmask 785408
    %v384 = vsel %vm383, %v373, %v377
    %v385 = vld [vmem:[%s6] sm:$0xff]
    %v386 = vld [vmem:[%s6 + $0x8] sm:$0xff]
    %v387 = vld [vmem:[%s6 + $0x10] sm:$0xff]
    %v388 = vld [vmem:[%s6 + $0x18] sm:$0xff]
    %v389 = vld [vmem:[%s6 + $0x20] sm:$0xff]
    %v390 = vld [vmem:[%s6 + $0x28] sm:$0xff]
    %v391 = vld [vmem:[%s6 + $0x30] sm:$0xff]
    %v392 = vld [vmem:[%s6 + $0x38] sm:$0xff]
    %v393 = vld [vmem:[%s6 + $0x40] sm:$0xff]
    %v394 = vld [vmem:[%s6 + $0x48] sm:$0xff]
    %v395 = vld [vmem:[%s6 + $0x50] sm:$0xff]
    %v396 = vld [vmem:[%s6 + $0x58] sm:$0xff]
    %v397 = vld [vmem:[%s6 + $0x60] sm:$0xff]
    %v398 = vld [vmem:[%s6 + $0x68] sm:$0xff]
    %v399 = vld [vmem:[%s6 + $0x70] sm:$0xff]
    %v400 = vld [vmem:[%s6 + $0x78] sm:$0xff]
    %v401 = vld [vmem:[%s6 + $0x80] sm:$0xff]
    %v402 = vld [vmem:[%s6 + $0x88] sm:$0xff]
    %v403 = vld [vmem:[%s6 + $0x90] sm:$0xff]
    %v404 = vld [vmem:[%s6 + $0x98] sm:$0xff]
    %v405 = vld [vmem:[%s6 + $0xa0] sm:$0xff]
    %v406 = vld [vmem:[%s6 + $0xa8] sm:$0xff]
    %v407 = vld [vmem:[%s6 + $0xb0] sm:$0xff]
    %v408 = vld [vmem:[%s6 + $0xb8] sm:$0xff]
    %v409 = vld [vmem:[%s6 + $0xc0] sm:$0xff]
    %v410 = vld [vmem:[%s6 + $0xc8] sm:$0xff]
    %v411 = vld [vmem:[%s6 + $0xd0] sm:$0xff]
    %v412 = vld [vmem:[%s6 + $0xd8] sm:$0xff]
    %v413 = vld [vmem:[%s6 + $0xe0] sm:$0xff]
    %v414 = vld [vmem:[%s6 + $0xe8] sm:$0xff]
    %v415 = vld [vmem:[%s6 + $0xf0] sm:$0xff]
    %v416 = vld [vmem:[%s6 + $0xf8] sm:$0xff]
    %v417 = vld [vmem:[%s6 + $0x100] sm:$0xff]
    %v418 = vld [vmem:[%s6 + $0x108] sm:$0xff]
    %v419 = vld [vmem:[%s6 + $0x110] sm:$0xff]
    %v420 = vld [vmem:[%s6 + $0x118] sm:$0xff]
    %v421 = vld [vmem:[%s6 + $0x120] sm:$0xff]
    %v422 = vld [vmem:[%s6 + $0x128] sm:$0xff]
    %v423 = vld [vmem:[%s6 + $0x130] sm:$0xff]
    %v424 = vld [vmem:[%s6 + $0x138] sm:$0xff]
    %v425 = vld [vmem:[%s6 + $0x140] sm:$0xff]
    %v426 = vld [vmem:[%s6 + $0x148] sm:$0xff]
    %v427 = vld [vmem:[%s6 + $0x150] sm:$0xff]
    %v428 = vld [vmem:[%s6 + $0x158] sm:$0xff]
    %v429 = vld [vmem:[%s6 + $0x160] sm:$0xff]
    %v430 = vld [vmem:[%s6 + $0x168] sm:$0xff]
    %v431 = vld [vmem:[%s6 + $0x170] sm:$0xff]
    %v432 = vld [vmem:[%s6 + $0x178] sm:$0xff]
    %v433 = vld [vmem:[%s6 + $0x180] sm:$0xff]
    %v434 = vld [vmem:[%s6 + $0x188] sm:$0xff]
    %v435 = vld [vmem:[%s6 + $0x190] sm:$0xff]
    %v436 = vld [vmem:[%s6 + $0x198] sm:$0xff]
    %v437 = vld [vmem:[%s6 + $0x1a0] sm:$0xff]
    %v438 = vld [vmem:[%s6 + $0x1a8] sm:$0xff]
    %v439 = vld [vmem:[%s6 + $0x1b0] sm:$0xff]
    %v440 = vld [vmem:[%s6 + $0x1b8] sm:$0xff]
    %v441 = vld [vmem:[%s6 + $0x1c0] sm:$0xff]
    %v442 = vld [vmem:[%s6 + $0x1c8] sm:$0xff]
    %v443 = vld [vmem:[%s6 + $0x1d0] sm:$0xff]
    %v444 = vld [vmem:[%s6 + $0x1d8] sm:$0xff]
    %v445 = vld [vmem:[%s6 + $0x1e0] sm:$0xff]
    %v446 = vld [vmem:[%s6 + $0x1e8] sm:$0xff]
    %v447 = vld [vmem:[%s6 + $0x1f0] sm:$0xff]
    %v448 = vld [vmem:[%s6 + $0x1f8] sm:$0xff]
    %v449 = vld [vmem:[%s6 + $0x200] sm:$0xff]
    %v450 = vld [vmem:[%s6 + $0x208] sm:$0xff]
    %v451 = vld [vmem:[%s6 + $0x210] sm:$0xff]
    %v452 = vld [vmem:[%s6 + $0x218] sm:$0xff]
    %v453 = vld [vmem:[%s6 + $0x220] sm:$0xff]
    %v454 = vld [vmem:[%s6 + $0x228] sm:$0xff]
    %v455 = vld [vmem:[%s6 + $0x230] sm:$0xff]
    %v456 = vld [vmem:[%s6 + $0x238] sm:$0xff]
    %v457 = vld [vmem:[%s6 + $0x240] sm:$0xff]
    %v458 = vld [vmem:[%s6 + $0x248] sm:$0xff]
    %v459 = vld [vmem:[%s6 + $0x250] sm:$0xff]
    %vm460 = vcmask 719872
    %v461 = vsel %vm460, %v377, 0
    %463 = vmatpush.msra.mxu0 %v400
    %464 = vmatpush.msra.mxu0 %v399
    %465 = vmatpush.msra.mxu0 %v398
    %466 = vmatpush.msra.mxu0 %v397
    %467 = vmatpush.msra.mxu0 %v396
    %468 = vmatpush.msra.mxu0 %v395
    %469 = vmatpush.msra.mxu0 %v394
    %470 = vmatpush.msra.mxu0 %v393
    %471 = vmatpush.msra.mxu0 %v392
    %472 = vmatpush.msra.mxu0 %v391
    %473 = vmatpush.msra.mxu0 %v390
    %474 = vmatpush.msra.mxu0 %v389
    %475 = vmatpush.msra.mxu0 %v388
    %476 = vmatpush.msra.mxu0 %v387
    %477 = vmatpush.msra.mxu0 %v386
    %478 = vmatpush.msra.mxu0 %v385
    %479 = vmatmul.f32.gmra.mxu0 %v379
    %v480 = vpop.f32.mrf.mxu0
    %v481 = vadd.f32 0.0, %v480
    %482 = vdwg.mxu0
    %483 = vmatpush.msra.mxu0 %v416
    %484 = vmatpush.msra.mxu0 %v415
    %485 = vmatpush.msra.mxu0 %v414
    %486 = vmatpush.msra.mxu0 %v413
    %487 = vmatpush.msra.mxu0 %v412
    %488 = vmatpush.msra.mxu0 %v411
    %489 = vmatpush.msra.mxu0 %v410
    %490 = vmatpush.msra.mxu0 %v409
    %491 = vmatpush.msra.mxu0 %v408
    %492 = vmatpush.msra.mxu0 %v407
    %493 = vmatpush.msra.mxu0 %v406
    %494 = vmatpush.msra.mxu0 %v405
    %495 = vmatpush.msra.mxu0 %v404
    %496 = vmatpush.msra.mxu0 %v403
    %497 = vmatpush.msra.mxu0 %v402
    %498 = vmatpush.msra.mxu0 %v401
    %499 = vmatmul.f32.gmra.mxu0 %v380
    %v500 = vpop.f32.mrf.mxu0
    %v501 = vadd.f32 %v481, %v500
    %502 = vdwg.mxu0
    %503 = vmatpush.msra.mxu0 %v432
    %504 = vmatpush.msra.mxu0 %v431
    %505 = vmatpush.msra.mxu0 %v430
    %506 = vmatpush.msra.mxu0 %v429
    %507 = vmatpush.msra.mxu0 %v428
    %508 = vmatpush.msra.mxu0 %v427
    %509 = vmatpush.msra.mxu0 %v426
    %510 = vmatpush.msra.mxu0 %v425
    %511 = vmatpush.msra.mxu0 %v424
    %512 = vmatpush.msra.mxu0 %v423
    %513 = vmatpush.msra.mxu0 %v422
    %514 = vmatpush.msra.mxu0 %v421
    %515 = vmatpush.msra.mxu0 %v420
    %516 = vmatpush.msra.mxu0 %v419
    %517 = vmatpush.msra.mxu0 %v418
    %518 = vmatpush.msra.mxu0 %v417
    %519 = vmatmul.f32.gmra.mxu0 %v382
    %v520 = vpop.f32.mrf.mxu0
    %v521 = vadd.f32 %v501, %v520
    %522 = vdwg.mxu0
    %523 = vmatpush.msra.mxu0 %v448
    %524 = vmatpush.msra.mxu0 %v447
    %525 = vmatpush.msra.mxu0 %v446
    %526 = vmatpush.msra.mxu0 %v445
    %527 = vmatpush.msra.mxu0 %v444
    %528 = vmatpush.msra.mxu0 %v443
    %529 = vmatpush.msra.mxu0 %v442
    %530 = vmatpush.msra.mxu0 %v441
    %531 = vmatpush.msra.mxu0 %v440
    %532 = vmatpush.msra.mxu0 %v439
    %533 = vmatpush.msra.mxu0 %v438
    %534 = vmatpush.msra.mxu0 %v437
    %535 = vmatpush.msra.mxu0 %v436
    %536 = vmatpush.msra.mxu0 %v435
    %537 = vmatpush.msra.mxu0 %v434
    %538 = vmatpush.msra.mxu0 %v433
    %539 = vmatmul.f32.gmra.mxu0 %v384
    %v540 = vpop.f32.mrf.mxu0
    %v541 = vadd.f32 %v521, %v540
    %542 = vdwg.mxu0
    %543 = vmatpush.msra.mxu0 0.0
    %544 = vmatpush.msra.mxu0 0.0
    %545 = vmatpush.msra.mxu0 0.0
    %546 = vmatpush.msra.mxu0 0.0
    %547 = vmatpush.msra.mxu0 0.0
    %548 = vmatpush.msra.mxu0 %v459
    %549 = vmatpush.msra.mxu0 %v458
    %550 = vmatpush.msra.mxu0 %v457
    %551 = vmatpush.msra.mxu0 %v456
    %552 = vmatpush.msra.mxu0 %v455
    %553 = vmatpush.msra.mxu0 %v454
    %554 = vmatpush.msra.mxu0 %v453
    %555 = vmatpush.msra.mxu0 %v452
    %556 = vmatpush.msra.mxu0 %v451
    %557 = vmatpush.msra.mxu0 %v450
    %558 = vmatpush.msra.mxu0 %v449
    %559 = vmatmul.f32.gmra.mxu0 %v461
    %v560 = vpop.f32.mrf.mxu0
    %v561 = vadd.f32 %v541, %v560
    %562 = vdwg.mxu0
    %v563 = vld [vmem:[%s7] sm:$0xff]
    %v564 = vld [vmem:[%s7 + $0x8] sm:$0xff]
    %v565 = vld [vmem:[%s7 + $0x10] sm:$0xff]
    %v566 = vld [vmem:[%s7 + $0x18] sm:$0xff]
    %v567 = vld [vmem:[%s7 + $0x20] sm:$0xff]
    %v568 = vld [vmem:[%s7 + $0x28] sm:$0xff]
    %v569 = vld [vmem:[%s7 + $0x30] sm:$0xff]
    %v570 = vld [vmem:[%s7 + $0x38] sm:$0xff]
    %v571 = vld [vmem:[%s7 + $0x40] sm:$0xff]
    %v572 = vld [vmem:[%s7 + $0x48] sm:$0xff]
    %v573 = vld [vmem:[%s7 + $0x50] sm:$0xff]
    %v574 = vld [vmem:[%s7 + $0x58] sm:$0xff]
    %v575 = vld [vmem:[%s7 + $0x60] sm:$0xff]
    %v576 = vld [vmem:[%s7 + $0x68] sm:$0xff]
    %v577 = vld [vmem:[%s7 + $0x70] sm:$0xff]
    %v578 = vld [vmem:[%s7 + $0x78] sm:$0xff]
    %v579 = vld [vmem:[%s7 + $0x80] sm:$0xff]
    %v580 = vld [vmem:[%s7 + $0x88] sm:$0xff]
    %v581 = vld [vmem:[%s7 + $0x90] sm:$0xff]
    %v582 = vld [vmem:[%s7 + $0x98] sm:$0xff]
    %v583 = vld [vmem:[%s7 + $0xa0] sm:$0xff]
    %v584 = vld [vmem:[%s7 + $0xa8] sm:$0xff]
    %v585 = vld [vmem:[%s7 + $0xb0] sm:$0xff]
    %v586 = vld [vmem:[%s7 + $0xb8] sm:$0xff]
    %v587 = vld [vmem:[%s7 + $0xc0] sm:$0xff]
    %v588 = vld [vmem:[%s7 + $0xc8] sm:$0xff]
    %v589 = vld [vmem:[%s7 + $0xd0] sm:$0xff]
    %v590 = vld [vmem:[%s7 + $0xd8] sm:$0xff]
    %v591 = vld [vmem:[%s7 + $0xe0] sm:$0xff]
    %v592 = vld [vmem:[%s7 + $0xe8] sm:$0xff]
    %v593 = vld [vmem:[%s7 + $0xf0] sm:$0xff]
    %v594 = vld [vmem:[%s7 + $0xf8] sm:$0xff]
    %v595 = vld [vmem:[%s7 + $0x100] sm:$0xff]
    %v596 = vld [vmem:[%s7 + $0x108] sm:$0xff]
    %v597 = vld [vmem:[%s7 + $0x110] sm:$0xff]
    %v598 = vld [vmem:[%s7 + $0x118] sm:$0xff]
    %v599 = vld [vmem:[%s7 + $0x120] sm:$0xff]
    %v600 = vld [vmem:[%s7 + $0x128] sm:$0xff]
    %v601 = vld [vmem:[%s7 + $0x130] sm:$0xff]
    %v602 = vld [vmem:[%s7 + $0x138] sm:$0xff]
    %v603 = vld [vmem:[%s7 + $0x140] sm:$0xff]
    %v604 = vld [vmem:[%s7 + $0x148] sm:$0xff]
    %v605 = vld [vmem:[%s7 + $0x150] sm:$0xff]
    %v606 = vld [vmem:[%s7 + $0x158] sm:$0xff]
    %v607 = vld [vmem:[%s7 + $0x160] sm:$0xff]
    %v608 = vld [vmem:[%s7 + $0x168] sm:$0xff]
    %v609 = vld [vmem:[%s7 + $0x170] sm:$0xff]
    %v610 = vld [vmem:[%s7 + $0x178] sm:$0xff]
    %v611 = vld [vmem:[%s7 + $0x180] sm:$0xff]
    %v612 = vld [vmem:[%s7 + $0x188] sm:$0xff]
    %v613 = vld [vmem:[%s7 + $0x190] sm:$0xff]
    %v614 = vld [vmem:[%s7 + $0x198] sm:$0xff]
    %v615 = vld [vmem:[%s7 + $0x1a0] sm:$0xff]
    %v616 = vld [vmem:[%s7 + $0x1a8] sm:$0xff]
    %v617 = vld [vmem:[%s7 + $0x1b0] sm:$0xff]
    %v618 = vld [vmem:[%s7 + $0x1b8] sm:$0xff]
    %v619 = vld [vmem:[%s7 + $0x1c0] sm:$0xff]
    %v620 = vld [vmem:[%s7 + $0x1c8] sm:$0xff]
    %v621 = vld [vmem:[%s7 + $0x1d0] sm:$0xff]
    %v622 = vld [vmem:[%s7 + $0x1d8] sm:$0xff]
    %v623 = vld [vmem:[%s7 + $0x1e0] sm:$0xff]
    %v624 = vld [vmem:[%s7 + $0x1e8] sm:$0xff]
    %v625 = vld [vmem:[%s7 + $0x1f0] sm:$0xff]
    %v626 = vld [vmem:[%s7 + $0x1f8] sm:$0xff]
    %v627 = vld [vmem:[%s7 + $0x200] sm:$0xff]
    %v628 = vld [vmem:[%s7 + $0x208] sm:$0xff]
    %v629 = vld [vmem:[%s7 + $0x210] sm:$0xff]
    %v630 = vld [vmem:[%s7 + $0x218] sm:$0xff]
    %v631 = vld [vmem:[%s7 + $0x220] sm:$0xff]
    %v632 = vld [vmem:[%s7 + $0x228] sm:$0xff]
    %v633 = vld [vmem:[%s7 + $0x230] sm:$0xff]
    %v634 = vld [vmem:[%s7 + $0x238] sm:$0xff]
    %v635 = vld [vmem:[%s7 + $0x240] sm:$0xff]
    %v636 = vld [vmem:[%s7 + $0x248] sm:$0xff]
    %v637 = vld [vmem:[%s7 + $0x250] sm:$0xff]
    %638 = vmatpush.msra.mxu0 %v578
    %639 = vmatpush.msra.mxu0 %v577
    %640 = vmatpush.msra.mxu0 %v576
    %641 = vmatpush.msra.mxu0 %v575
    %642 = vmatpush.msra.mxu0 %v574
    %643 = vmatpush.msra.mxu0 %v573
    %644 = vmatpush.msra.mxu0 %v572
    %645 = vmatpush.msra.mxu0 %v571
    %646 = vmatpush.msra.mxu0 %v570
    %647 = vmatpush.msra.mxu0 %v569
    %648 = vmatpush.msra.mxu0 %v568
    %649 = vmatpush.msra.mxu0 %v567
    %650 = vmatpush.msra.mxu0 %v566
    %651 = vmatpush.msra.mxu0 %v565
    %652 = vmatpush.msra.mxu0 %v564
    %653 = vmatpush.msra.mxu0 %v563
    %654 = vmatmul.f32.gmra.mxu0 %v379
    %v655 = vpop.f32.mrf.mxu0
    %v656 = vadd.f32 0.0, %v655
    %657 = vdwg.mxu0
    %658 = vmatpush.msra.mxu0 %v594
    %659 = vmatpush.msra.mxu0 %v593
    %660 = vmatpush.msra.mxu0 %v592
    %661 = vmatpush.msra.mxu0 %v591
    %662 = vmatpush.msra.mxu0 %v590
    %663 = vmatpush.msra.mxu0 %v589
    %664 = vmatpush.msra.mxu0 %v588
    %665 = vmatpush.msra.mxu0 %v587
    %666 = vmatpush.msra.mxu0 %v586
    %667 = vmatpush.msra.mxu0 %v585
    %668 = vmatpush.msra.mxu0 %v584
    %669 = vmatpush.msra.mxu0 %v583
    %670 = vmatpush.msra.mxu0 %v582
    %671 = vmatpush.msra.mxu0 %v581
    %672 = vmatpush.msra.mxu0 %v580
    %673 = vmatpush.msra.mxu0 %v579
    %674 = vmatmul.f32.gmra.mxu0 %v380
    %v675 = vpop.f32.mrf.mxu0
    %v676 = vadd.f32 %v656, %v675
    %677 = vdwg.mxu0
    %678 = vmatpush.msra.mxu0 %v610
    %679 = vmatpush.msra.mxu0 %v609
    %680 = vmatpush.msra.mxu0 %v608
    %681 = vmatpush.msra.mxu0 %v607
    %682 = vmatpush.msra.mxu0 %v606
    %683 = vmatpush.msra.mxu0 %v605
    %684 = vmatpush.msra.mxu0 %v604
    %685 = vmatpush.msra.mxu0 %v603
    %686 = vmatpush.msra.mxu0 %v602
    %687 = vmatpush.msra.mxu0 %v601
    %688 = vmatpush.msra.mxu0 %v600
    %689 = vmatpush.msra.mxu0 %v599
    %690 = vmatpush.msra.mxu0 %v598
    %691 = vmatpush.msra.mxu0 %v597
    %692 = vmatpush.msra.mxu0 %v596
    %693 = vmatpush.msra.mxu0 %v595
    %694 = vmatmul.f32.gmra.mxu0 %v382
    %v695 = vpop.f32.mrf.mxu0
    %v696 = vadd.f32 %v676, %v695
    %697 = vdwg.mxu0
    %698 = vmatpush.msra.mxu0 %v626
    %699 = vmatpush.msra.mxu0 %v625
    %700 = vmatpush.msra.mxu0 %v624
    %701 = vmatpush.msra.mxu0 %v623
    %702 = vmatpush.msra.mxu0 %v622
    %703 = vmatpush.msra.mxu0 %v621
    %704 = vmatpush.msra.mxu0 %v620
    %705 = vmatpush.msra.mxu0 %v619
    %706 = vmatpush.msra.mxu0 %v618
    %707 = vmatpush.msra.mxu0 %v617
    %708 = vmatpush.msra.mxu0 %v616
    %709 = vmatpush.msra.mxu0 %v615
    %710 = vmatpush.msra.mxu0 %v614
    %711 = vmatpush.msra.mxu0 %v613
    %712 = vmatpush.msra.mxu0 %v612
    %713 = vmatpush.msra.mxu0 %v611
    %714 = vmatmul.f32.gmra.mxu0 %v384
    %v715 = vpop.f32.mrf.mxu0
    %v716 = vadd.f32 %v696, %v715
    %717 = vdwg.mxu0
    %718 = vmatpush.msra.mxu0 0.0
    %719 = vmatpush.msra.mxu0 0.0
    %720 = vmatpush.msra.mxu0 0.0
    %721 = vmatpush.msra.mxu0 0.0
    %722 = vmatpush.msra.mxu0 0.0
    %723 = vmatpush.msra.mxu0 %v637
    %724 = vmatpush.msra.mxu0 %v636
    %725 = vmatpush.msra.mxu0 %v635
    %726 = vmatpush.msra.mxu0 %v634
    %727 = vmatpush.msra.mxu0 %v633
    %728 = vmatpush.msra.mxu0 %v632
    %729 = vmatpush.msra.mxu0 %v631
    %730 = vmatpush.msra.mxu0 %v630
    %731 = vmatpush.msra.mxu0 %v629
    %732 = vmatpush.msra.mxu0 %v628
    %733 = vmatpush.msra.mxu0 %v627
    %734 = vmatmul.f32.gmra.mxu0 %v461
    %v735 = vpop.f32.mrf.mxu0
    %v736 = vadd.f32 %v716, %v735
    %737 = vdwg.mxu0
    %v738 = vmax.f32 %v561, %v736
    %v739 = vld [vmem:[%s9] sm:$0xf]
    %vm740 = vcmask 64512
    %v742 = vsel %vm740, %v739, 0
    %744 = vmatpush.msra.mxu0 0.0
    %745 = vmatpush.msra.mxu0 0.0
    %746 = vmatpush.msra.mxu0 0.0
    %747 = vmatpush.msra.mxu0 0.0
    %748 = vmatpush.msra.mxu0 0.0
    %749 = vmatpush.msra.mxu0 0.0
    %750 = vmatpush.msra.mxu0 0.0
    %751 = vmatpush.msra.mxu0 0.0
    %752 = vmatpush.msra.mxu0 0.0
    %753 = vmatpush.msra.mxu0 0.0
    %754 = vmatpush.msra.mxu0 0.0
    %755 = vmatpush.msra.mxu0 0.0
    %756 = vmatpush.msra.mxu0 0.0
    %757 = vmatpush.msra.mxu0 0.0
    %758 = vmatpush.msra.mxu0 0.0
    %759 = vmatpush.msra.mxu0 %v738
    %760 = vmatmul.f32.gmra.mxu0 %v742
    %v761 = vpop.f32.mrf.mxu0
    %v762 = vadd.f32 0.0, %v761
    %763 = vdwg.mxu0
    %v764 = vld [vmem:[%s10] sm:$0xf]
    %v766 = vsel %vm740, %v764, 0
    %768 = vmatpush.msra.mxu0 0.0
    %769 = vmatpush.msra.mxu0 0.0
    %770 = vmatpush.msra.mxu0 0.0
    %771 = vmatpush.msra.mxu0 0.0
    %772 = vmatpush.msra.mxu0 0.0
    %773 = vmatpush.msra.mxu0 0.0
    %774 = vmatpush.msra.mxu0 0.0
    %775 = vmatpush.msra.mxu0 0.0
    %776 = vmatpush.msra.mxu0 0.0
    %777 = vmatpush.msra.mxu0 0.0
    %778 = vmatpush.msra.mxu0 0.0
    %779 = vmatpush.msra.mxu0 0.0
    %780 = vmatpush.msra.mxu0 0.0
    %781 = vmatpush.msra.mxu0 0.0
    %782 = vmatpush.msra.mxu0 0.0
    %783 = vmatpush.msra.mxu0 %v738
    %784 = vmatmul.f32.gmra.mxu0 %v766
    %v785 = vpop.f32.mrf.mxu0
    %v786 = vadd.f32 0.0, %v785
    %787 = vdwg.mxu0
    %v788 = vmax.f32 %v762, %v786
    %v789 = vld [vmem:[%s8] sm:$0x1]
    %v791 = vperm.slane %v789, 0
    %v793 = vadd.f32 %v788, %v791
    %v794 = vmax.f32 %v793, 0.0
    %vm795 = vcmask 650240
    %796 = vst.msk [vmem:[#allocation3] sm:$0xf] %vm795, %v794
    %v797 = vld [vmem:[#allocation3] sm:$0x1]
    %v798 = vld [vmem:[#allocation3 + $0x1] sm:$0x1]
    %v799 = vld [vmem:[#allocation3 + $0x2] sm:$0x1]
    %v800 = vld [vmem:[#allocation3 + $0x3] sm:$0x1]
    %802 = vrot.lane.b32.xlu0 %v798, 80
    %v803 = vpop.permute.xlu0 %802
    %806 = vrot.lane.b32.xlu0 %v799, 32
    %v807 = vpop.permute.xlu0 %806
    %810 = vrot.lane.b32.xlu0 %v800, 112
    %v811 = vpop.permute.xlu0 %810
    %vm813 = vcmask 654336
    %v814 = vsel %vm813, %v797, %v803
    %vm815 = vcmask 261120
    %v816 = vsel %vm815, %v803, %v807
    %v817 = vsel %vm120, %v816, %v811
    %v818 = vld [vmem:[%s11] sm:$0xff]
    %v819 = vld [vmem:[%s11 + $0x8] sm:$0xff]
    %v820 = vld [vmem:[%s11 + $0x10] sm:$0xff]
    %v821 = vld [vmem:[%s11 + $0x18] sm:$0xff]
    %v822 = vld [vmem:[%s11 + $0x20] sm:$0xff]
    %v823 = vld [vmem:[%s11 + $0x28] sm:$0xff]
    %v824 = vld [vmem:[%s11 + $0x30] sm:$0xff]
    %v825 = vld [vmem:[%s11 + $0x38] sm:$0xff]
    %v826 = vld [vmem:[%s11 + $0x40] sm:$0xff]
    %v827 = vld [vmem:[%s11 + $0x48] sm:$0xff]
    %v828 = vld [vmem:[%s11 + $0x50] sm:$0xff]
    %v829 = vld [vmem:[%s11 + $0x58] sm:$0xff]
    %v830 = vld [vmem:[%s11 + $0x60] sm:$0xff]
    %v831 = vld [vmem:[%s11 + $0x68] sm:$0xff]
    %v832 = vld [vmem:[%s11 + $0x70] sm:$0xff]
    %v833 = vld [vmem:[%s11 + $0x78] sm:$0xff]
    %v834 = vld [vmem:[%s11 + $0x80] sm:$0xff]
    %v835 = vld [vmem:[%s11 + $0x88] sm:$0xff]
    %v836 = vld [vmem:[%s11 + $0x90] sm:$0xff]
    %v837 = vld [vmem:[%s11 + $0x98] sm:$0xff]
    %v838 = vld [vmem:[%s11 + $0xa0] sm:$0xff]
    %v839 = vld [vmem:[%s11 + $0xa8] sm:$0xff]
    %v840 = vld [vmem:[%s11 + $0xb0] sm:$0xff]
    %v841 = vld [vmem:[%s11 + $0xb8] sm:$0xff]
    %v842 = vld [vmem:[%s11 + $0xc0] sm:$0xff]
    %v843 = vld [vmem:[%s11 + $0xc8] sm:$0xff]
    %v844 = vld [vmem:[%s11 + $0xd0] sm:$0xff]
    %v845 = vld [vmem:[%s11 + $0xd8] sm:$0xff]
    %v846 = vld [vmem:[%s11 + $0xe0] sm:$0xff]
    %v847 = vld [vmem:[%s11 + $0xe8] sm:$0xff]
    %v848 = vld [vmem:[%s11 + $0xf0] sm:$0xff]
    %v849 = vld [vmem:[%s11 + $0xf8] sm:$0xff]
    %v850 = vld [vmem:[%s11 + $0x100] sm:$0xff]
    %v851 = vld [vmem:[%s11 + $0x108] sm:$0xff]
    %v852 = vld [vmem:[%s11 + $0x110] sm:$0xff]
    %v853 = vld [vmem:[%s11 + $0x118] sm:$0xff]
    %v854 = vld [vmem:[%s11 + $0x120] sm:$0xff]
    %v855 = vld [vmem:[%s11 + $0x128] sm:$0xff]
    %v856 = vld [vmem:[%s11 + $0x130] sm:$0xff]
    %v857 = vld [vmem:[%s11 + $0x138] sm:$0xff]
    %v858 = vld [vmem:[%s12] sm:$0x1]
    %vm859 = vcmask 523264
    %v860 = vsel %vm859, %v811, 0
    %862 = vmatpush.msra.mxu0 %v833
    %863 = vmatpush.msra.mxu0 %v832
    %864 = vmatpush.msra.mxu0 %v831
    %865 = vmatpush.msra.mxu0 %v830
    %866 = vmatpush.msra.mxu0 %v829
    %867 = vmatpush.msra.mxu0 %v828
    %868 = vmatpush.msra.mxu0 %v827
    %869 = vmatpush.msra.mxu0 %v826
    %870 = vmatpush.msra.mxu0 %v825
    %871 = vmatpush.msra.mxu0 %v824
    %872 = vmatpush.msra.mxu0 %v823
    %873 = vmatpush.msra.mxu0 %v822
    %874 = vmatpush.msra.mxu0 %v821
    %875 = vmatpush.msra.mxu0 %v820
    %876 = vmatpush.msra.mxu0 %v819
    %877 = vmatpush.msra.mxu0 %v818
    %878 = vmatmul.f32.gmra.mxu0 %v814
    %v879 = vpop.f32.mrf.mxu0
    %v880 = vadd.f32 %v858, %v879
    %881 = vdwg.mxu0
    %882 = vmatpush.msra.mxu0 %v849
    %883 = vmatpush.msra.mxu0 %v848
    %884 = vmatpush.msra.mxu0 %v847
    %885 = vmatpush.msra.mxu0 %v846
    %886 = vmatpush.msra.mxu0 %v845
    %887 = vmatpush.msra.mxu0 %v844
    %888 = vmatpush.msra.mxu0 %v843
    %889 = vmatpush.msra.mxu0 %v842
    %890 = vmatpush.msra.mxu0 %v841
    %891 = vmatpush.msra.mxu0 %v840
    %892 = vmatpush.msra.mxu0 %v839
    %893 = vmatpush.msra.mxu0 %v838
    %894 = vmatpush.msra.mxu0 %v837
    %895 = vmatpush.msra.mxu0 %v836
    %896 = vmatpush.msra.mxu0 %v835
    %897 = vmatpush.msra.mxu0 %v834
    %898 = vmatmul.f32.gmra.mxu0 %v817
    %v899 = vpop.f32.mrf.mxu0
    %v900 = vadd.f32 %v880, %v899
    %901 = vdwg.mxu0
    %902 = vmatpush.msra.mxu0 0.0
    %903 = vmatpush.msra.mxu0 0.0
    %904 = vmatpush.msra.mxu0 0.0
    %905 = vmatpush.msra.mxu0 0.0
    %906 = vmatpush.msra.mxu0 0.0
    %907 = vmatpush.msra.mxu0 0.0
    %908 = vmatpush.msra.mxu0 0.0
    %909 = vmatpush.msra.mxu0 0.0
    %910 = vmatpush.msra.mxu0 %v857
    %911 = vmatpush.msra.mxu0 %v856
    %912 = vmatpush.msra.mxu0 %v855
    %913 = vmatpush.msra.mxu0 %v854
    %914 = vmatpush.msra.mxu0 %v853
    %915 = vmatpush.msra.mxu0 %v852
    %916 = vmatpush.msra.mxu0 %v851
    %917 = vmatpush.msra.mxu0 %v850
    %918 = vmatmul.f32.gmra.mxu0 %v860
    %v919 = vpop.f32.mrf.mxu0
    %v920 = vadd.f32 %v900, %v919
    %921 = vdwg.mxu0
    %vm922 = vcmask 73728
    %v923 = vsel %vm922, %v920, -inf
    %924 = vmax.xlane.f32.xlu0 %v923
    %v925 = vpop.xlane.xlu0 %924
    %v926 = vsub.f32 %v920, %v925
    %v927 = vmul.f32 %v926, 1.442695
    %v928 = vpow.pop %v927
    %v929 = vsel %vm922, %v928, 0.0
    %930 = vadd.xlane.f32.xlu0 %v929
    %v931 = vpop.xlane.xlu0 %930
    %v932 = vlog2.pop %v931
    %v933 = vmul.f32 %v932, 0.6931472
    %v934 = vadd.f32 %v925, %v933
    %v935 = vsub.f32 %v920, %v934
    %936 = vst.msk [vmem:[#allocation4] sm:$0x1] %vm922, %v935
    %s937 = scalar_lea.vmem %s0, 32
    %v938 = vld [vmem:[%s937] sm:$0xff]
    %v939 = vld [vmem:[%s937 + $0x8] sm:$0xff]
    %v940 = vld [vmem:[%s937 + $0x10] sm:$0xff]
    %v941 = vld [vmem:[%s937 + $0x1] sm:$0xff]
    %v942 = vld [vmem:[%s937 + $0x9] sm:$0xff]
    %v943 = vld [vmem:[%s937 + $0x11] sm:$0xff]
    %v944 = vld [vmem:[%s937 + $0x2] sm:$0xff]
    %v945 = vld [vmem:[%s937 + $0xa] sm:$0xff]
    %v946 = vld [vmem:[%s937 + $0x12] sm:$0xff]
    %v947 = vld [vmem:[%s937 + $0x3] sm:$0xff]
    %v948 = vld [vmem:[%s937 + $0xb] sm:$0xff]
    %v949 = vld [vmem:[%s937 + $0x13] sm:$0xff]
    %v950 = vld [vmem:[%s937 + $0x4] sm:$0xff]
    %v951 = vld [vmem:[%s937 + $0xc] sm:$0xff]
    %v952 = vld [vmem:[%s937 + $0x14] sm:$0xff]
    %956 = vrot.lane.b32.xlu0 %v941, 28
    %v957 = vpop.permute.xlu0 %956
    %958 = vrot.lane.b32.xlu0 %v942, 28
    %v959 = vpop.permute.xlu0 %958
    %960 = vrot.lane.b32.xlu0 %v943, 28
    %v961 = vpop.permute.xlu0 %960
    %968 = vrot.lane.b32.xlu0 %v944, 56
    %v969 = vpop.permute.xlu0 %968
    %970 = vrot.lane.b32.xlu0 %v945, 56
    %v971 = vpop.permute.xlu0 %970
    %972 = vrot.lane.b32.xlu0 %v946, 56
    %v973 = vpop.permute.xlu0 %972
    %980 = vrot.lane.b32.xlu0 %v947, 84
    %v981 = vpop.permute.xlu0 %980
    %982 = vrot.lane.b32.xlu0 %v948, 84
    %v983 = vpop.permute.xlu0 %982
    %984 = vrot.lane.b32.xlu0 %v949, 84
    %v985 = vpop.permute.xlu0 %984
    %992 = vrot.lane.b32.xlu0 %v950, 112
    %v993 = vpop.permute.xlu0 %992
    %994 = vrot.lane.b32.xlu0 %v951, 112
    %v995 = vpop.permute.xlu0 %994
    %996 = vrot.lane.b32.xlu0 %v952, 112
    %v997 = vpop.permute.xlu0 %996
    %v1001 = vsel %vm108, %v938, %v957
    %v1002 = vsel %vm108, %v939, %v959
    %v1003 = vsel %vm108, %v940, %v961
    %v1004 = vsel %vm112, %v1001, %v969
    %v1005 = vsel %vm112, %v1002, %v971
    %v1006 = vsel %vm112, %v1003, %v973
    %v1007 = vsel %vm116, %v1004, %v981
    %v1008 = vsel %vm116, %v1005, %v983
    %v1009 = vsel %vm116, %v1006, %v985
    %v1010 = vsel %vm120, %v1007, %v993
    %v1011 = vsel %vm120, %v1008, %v995
    %v1012 = vsel %vm120, %v1009, %v997
    %v1013 = vld [vmem:[%s1] sm:$0xff]
    %v1014 = vld [vmem:[%s1 + $0x8] sm:$0xff]
    %v1015 = vld [vmem:[%s1 + $0x10] sm:$0xff]
    %v1016 = vld [vmem:[%s1 + $0x18] sm:$0xff]
    %v1017 = vld [vmem:[%s1 + $0x20] sm:$0xff]
    %v1018 = vld [vmem:[%s1 + $0x28] sm:$0xff]
    %v1019 = vld [vmem:[%s1 + $0x30] sm:$0xff]
    %v1020 = vld [vmem:[%s1 + $0x38] sm:$0xff]
    %v1021 = vld [vmem:[%s1 + $0x40] sm:$0xff]
    %v1022 = vld [vmem:[%s1 + $0x48] sm:$0xff]
    %v1023 = vld [vmem:[%s1 + $0x50] sm:$0xff]
    %v1024 = vld [vmem:[%s1 + $0x58] sm:$0xff]
    %v1025 = vld [vmem:[%s1 + $0x60] sm:$0xff]
    %v1026 = vld [vmem:[%s1 + $0x68] sm:$0xff]
    %v1027 = vld [vmem:[%s1 + $0x70] sm:$0xff]
    %v1028 = vld [vmem:[%s1 + $0x78] sm:$0xff]
    %v1029 = vld [vmem:[%s1 + $0x80] sm:$0xff]
    %v1030 = vld [vmem:[%s1 + $0x88] sm:$0xf]
    %v1031 = vsel %vm142, %v993, 0
    %v1033 = vsel %vm142, %v995, 0
    %v1035 = vsel %vm142, %v997, 0
    %v1038 = vsel %vm149, %v1030, 0
    %1040 = vmatpush.msra.mxu0 %v1028
    %1041 = vmatpush.msra.mxu0 %v1027
    %1042 = vmatpush.msra.mxu0 %v1026
    %1043 = vmatpush.msra.mxu0 %v1025
    %1044 = vmatpush.msra.mxu0 %v1024
    %1045 = vmatpush.msra.mxu0 %v1023
    %1046 = vmatpush.msra.mxu0 %v1022
    %1047 = vmatpush.msra.mxu0 %v1021
    %1048 = vmatpush.msra.mxu0 %v1020
    %1049 = vmatpush.msra.mxu0 %v1019
    %1050 = vmatpush.msra.mxu0 %v1018
    %1051 = vmatpush.msra.mxu0 %v1017
    %1052 = vmatpush.msra.mxu0 %v1016
    %1053 = vmatpush.msra.mxu0 %v1015
    %1054 = vmatpush.msra.mxu0 %v1014
    %1055 = vmatpush.msra.mxu0 %v1013
    %1056 = vmatmul.f32.gmra.mxu0 %v1010
    %v1057 = vpop.f32.mrf.mxu0
    %v1058 = vadd.f32 0.0, %v1057
    %1059 = vmatmul.f32.gmra.mxu0 %v1011
    %v1060 = vpop.f32.mrf.mxu0
    %v1061 = vadd.f32 0.0, %v1060
    %1062 = vmatmul.f32.gmra.mxu0 %v1012
    %v1063 = vpop.f32.mrf.mxu0
    %v1064 = vadd.f32 0.0, %v1063
    %1065 = vdwg.mxu0
    %1066 = vmatpush.msra.mxu0 0.0
    %1067 = vmatpush.msra.mxu0 0.0
    %1068 = vmatpush.msra.mxu0 0.0
    %1069 = vmatpush.msra.mxu0 0.0
    %1070 = vmatpush.msra.mxu0 0.0
    %1071 = vmatpush.msra.mxu0 0.0
    %1072 = vmatpush.msra.mxu0 0.0
    %1073 = vmatpush.msra.mxu0 0.0
    %1074 = vmatpush.msra.mxu0 0.0
    %1075 = vmatpush.msra.mxu0 0.0
    %1076 = vmatpush.msra.mxu0 0.0
    %1077 = vmatpush.msra.mxu0 0.0
    %1078 = vmatpush.msra.mxu0 0.0
    %1079 = vmatpush.msra.mxu0 0.0
    %1080 = vmatpush.msra.mxu0 %v1038
    %1081 = vmatpush.msra.mxu0 %v1029
    %1082 = vmatmul.f32.gmra.mxu0 %v1031
    %v1083 = vpop.f32.mrf.mxu0
    %v1084 = vadd.f32 %v1058, %v1083
    %1085 = vmatmul.f32.gmra.mxu0 %v1033
    %v1086 = vpop.f32.mrf.mxu0
    %v1087 = vadd.f32 %v1061, %v1086
    %1088 = vmatmul.f32.gmra.mxu0 %v1035
    %v1089 = vpop.f32.mrf.mxu0
    %v1090 = vadd.f32 %v1064, %v1089
    %1091 = vdwg.mxu0
    %v1092 = vld [vmem:[%s2] sm:$0xff]
    %v1093 = vld [vmem:[%s2 + $0x8] sm:$0xff]
    %v1094 = vld [vmem:[%s2 + $0x10] sm:$0xff]
    %v1095 = vld [vmem:[%s2 + $0x18] sm:$0xff]
    %v1096 = vld [vmem:[%s2 + $0x20] sm:$0xff]
    %v1097 = vld [vmem:[%s2 + $0x28] sm:$0xff]
    %v1098 = vld [vmem:[%s2 + $0x30] sm:$0xff]
    %v1099 = vld [vmem:[%s2 + $0x38] sm:$0xff]
    %v1100 = vld [vmem:[%s2 + $0x40] sm:$0xff]
    %v1101 = vld [vmem:[%s2 + $0x48] sm:$0xff]
    %v1102 = vld [vmem:[%s2 + $0x50] sm:$0xff]
    %v1103 = vld [vmem:[%s2 + $0x58] sm:$0xff]
    %v1104 = vld [vmem:[%s2 + $0x60] sm:$0xff]
    %v1105 = vld [vmem:[%s2 + $0x68] sm:$0xff]
    %v1106 = vld [vmem:[%s2 + $0x70] sm:$0xff]
    %v1107 = vld [vmem:[%s2 + $0x78] sm:$0xff]
    %v1108 = vld [vmem:[%s2 + $0x80] sm:$0xff]
    %v1109 = vld [vmem:[%s2 + $0x88] sm:$0xf]
    %v1111 = vsel %vm149, %v1109, 0
    %1113 = vmatpush.msra.mxu0 %v1107
    %1114 = vmatpush.msra.mxu0 %v1106
    %1115 = vmatpush.msra.mxu0 %v1105
    %1116 = vmatpush.msra.mxu0 %v1104
    %1117 = vmatpush.msra.mxu0 %v1103
    %1118 = vmatpush.msra.mxu0 %v1102
    %1119 = vmatpush.msra.mxu0 %v1101
    %1120 = vmatpush.msra.mxu0 %v1100
    %1121 = vmatpush.msra.mxu0 %v1099
    %1122 = vmatpush.msra.mxu0 %v1098
    %1123 = vmatpush.msra.mxu0 %v1097
    %1124 = vmatpush.msra.mxu0 %v1096
    %1125 = vmatpush.msra.mxu0 %v1095
    %1126 = vmatpush.msra.mxu0 %v1094
    %1127 = vmatpush.msra.mxu0 %v1093
    %1128 = vmatpush.msra.mxu0 %v1092
    %1129 = vmatmul.f32.gmra.mxu0 %v1010
    %v1130 = vpop.f32.mrf.mxu0
    %v1131 = vadd.f32 0.0, %v1130
    %1132 = vmatmul.f32.gmra.mxu0 %v1011
    %v1133 = vpop.f32.mrf.mxu0
    %v1134 = vadd.f32 0.0, %v1133
    %1135 = vmatmul.f32.gmra.mxu0 %v1012
    %v1136 = vpop.f32.mrf.mxu0
    %v1137 = vadd.f32 0.0, %v1136
    %1138 = vdwg.mxu0
    %1139 = vmatpush.msra.mxu0 0.0
    %1140 = vmatpush.msra.mxu0 0.0
    %1141 = vmatpush.msra.mxu0 0.0
    %1142 = vmatpush.msra.mxu0 0.0
    %1143 = vmatpush.msra.mxu0 0.0
    %1144 = vmatpush.msra.mxu0 0.0
    %1145 = vmatpush.msra.mxu0 0.0
    %1146 = vmatpush.msra.mxu0 0.0
    %1147 = vmatpush.msra.mxu0 0.0
    %1148 = vmatpush.msra.mxu0 0.0
    %1149 = vmatpush.msra.mxu0 0.0
    %1150 = vmatpush.msra.mxu0 0.0
    %1151 = vmatpush.msra.mxu0 0.0
    %1152 = vmatpush.msra.mxu0 0.0
    %1153 = vmatpush.msra.mxu0 %v1111
    %1154 = vmatpush.msra.mxu0 %v1108
    %1155 = vmatmul.f32.gmra.mxu0 %v1031
    %v1156 = vpop.f32.mrf.mxu0
    %v1157 = vadd.f32 %v1131, %v1156
    %1158 = vmatmul.f32.gmra.mxu0 %v1033
    %v1159 = vpop.f32.mrf.mxu0
    %v1160 = vadd.f32 %v1134, %v1159
    %1161 = vmatmul.f32.gmra.mxu0 %v1035
    %v1162 = vpop.f32.mrf.mxu0
    %v1163 = vadd.f32 %v1137, %v1162
    %1164 = vdwg.mxu0
    %v1165 = vmax.f32 %v1084, %v1157
    %v1166 = vmax.f32 %v1087, %v1160
    %v1167 = vmax.f32 %v1090, %v1163
    %v1168 = vld [vmem:[%s4] sm:$0xff]
    %v1169 = vld [vmem:[%s4 + $0x8] sm:$0xf]
    %v1171 = vsel %vm283, %v1168, 0
    %v1174 = vsel %vm283, %v1169, 0
    %1176 = vmatpush.msra.mxu0 0.0
    %1177 = vmatpush.msra.mxu0 0.0
    %1178 = vmatpush.msra.mxu0 0.0
    %1179 = vmatpush.msra.mxu0 0.0
    %1180 = vmatpush.msra.mxu0 0.0
    %1181 = vmatpush.msra.mxu0 0.0
    %1182 = vmatpush.msra.mxu0 0.0
    %1183 = vmatpush.msra.mxu0 0.0
    %1184 = vmatpush.msra.mxu0 0.0
    %1185 = vmatpush.msra.mxu0 0.0
    %1186 = vmatpush.msra.mxu0 0.0
    %1187 = vmatpush.msra.mxu0 0.0
    %1188 = vmatpush.msra.mxu0 0.0
    %1189 = vmatpush.msra.mxu0 %v1167
    %1190 = vmatpush.msra.mxu0 %v1166
    %1191 = vmatpush.msra.mxu0 %v1165
    %1192 = vmatmul.f32.gmra.mxu0 %v1171
    %v1193 = vpop.f32.mrf.mxu0
    %v1194 = vadd.f32 0.0, %v1193
    %1195 = vmatmul.f32.gmra.mxu0 %v1174
    %v1196 = vpop.f32.mrf.mxu0
    %v1197 = vadd.f32 0.0, %v1196
    %1198 = vdwg.mxu0
    %v1199 = vld [vmem:[%s5] sm:$0xff]
    %v1200 = vld [vmem:[%s5 + $0x8] sm:$0xf]
    %v1202 = vsel %vm283, %v1199, 0
    %v1205 = vsel %vm283, %v1200, 0
    %1207 = vmatpush.msra.mxu0 0.0
    %1208 = vmatpush.msra.mxu0 0.0
    %1209 = vmatpush.msra.mxu0 0.0
    %1210 = vmatpush.msra.mxu0 0.0
    %1211 = vmatpush.msra.mxu0 0.0
    %1212 = vmatpush.msra.mxu0 0.0
    %1213 = vmatpush.msra.mxu0 0.0
    %1214 = vmatpush.msra.mxu0 0.0
    %1215 = vmatpush.msra.mxu0 0.0
    %1216 = vmatpush.msra.mxu0 0.0
    %1217 = vmatpush.msra.mxu0 0.0
    %1218 = vmatpush.msra.mxu0 0.0
    %1219 = vmatpush.msra.mxu0 0.0
    %1220 = vmatpush.msra.mxu0 %v1167
    %1221 = vmatpush.msra.mxu0 %v1166
    %1222 = vmatpush.msra.mxu0 %v1165
    %1223 = vmatmul.f32.gmra.mxu0 %v1202
    %v1224 = vpop.f32.mrf.mxu0
    %v1225 = vadd.f32 0.0, %v1224
    %1226 = vmatmul.f32.gmra.mxu0 %v1205
    %v1227 = vpop.f32.mrf.mxu0
    %v1228 = vadd.f32 0.0, %v1227
    %1229 = vdwg.mxu0
    %v1230 = vmax.f32 %v1194, %v1225
    %v1231 = vmax.f32 %v1197, %v1228
    %v1232 = vld [vmem:[%s3] sm:$0x1]
    %v1234 = vperm.slane %v1232, 0
    %v1236 = vadd.f32 %v1230, %v1234
    %v1237 = vadd.f32 %v1231, %v1234
    %v1238 = vmax.f32 %v1236, 0.0
    %v1239 = vmax.f32 %v1237, 0.0
    %1240 = vst.msk [vmem:[#allocation2] sm:$0xff] %vm354, %v1238
    %1241 = vst.msk [vmem:[#allocation2 + $0x8] sm:$0xf] %vm356, %v1239
    %v1242 = vld [vmem:[#allocation2] sm:$0xff]
    %v1243 = vld [vmem:[#allocation2 + $0x1] sm:$0xff]
    %v1244 = vld [vmem:[#allocation2 + $0x2] sm:$0xff]
    %v1245 = vld [vmem:[#allocation2 + $0x3] sm:$0xff]
    %v1246 = vld [vmem:[#allocation2 + $0x4] sm:$0xff]
    %1248 = vrot.lane.b32.xlu0 %v1243, 120
    %v1249 = vpop.permute.xlu0 %1248
    %1252 = vrot.lane.b32.xlu0 %v1244, 112
    %v1253 = vpop.permute.xlu0 %1252
    %1256 = vrot.lane.b32.xlu0 %v1245, 104
    %v1257 = vpop.permute.xlu0 %1256
    %1260 = vrot.lane.b32.xlu0 %v1246, 96
    %v1261 = vpop.permute.xlu0 %1260
    %v1263 = vsel %vm354, %v1242, %v1249
    %v1264 = vsel %vm120, %v1249, %v1253
    %v1265 = vsel %vm381, %v1253, %v1257
    %v1266 = vsel %vm383, %v1257, %v1261
    %v1267 = vld [vmem:[%s6] sm:$0xff]
    %v1268 = vld [vmem:[%s6 + $0x8] sm:$0xff]
    %v1269 = vld [vmem:[%s6 + $0x10] sm:$0xff]
    %v1270 = vld [vmem:[%s6 + $0x18] sm:$0xff]
    %v1271 = vld [vmem:[%s6 + $0x20] sm:$0xff]
    %v1272 = vld [vmem:[%s6 + $0x28] sm:$0xff]
    %v1273 = vld [vmem:[%s6 + $0x30] sm:$0xff]
    %v1274 = vld [vmem:[%s6 + $0x38] sm:$0xff]
    %v1275 = vld [vmem:[%s6 + $0x40] sm:$0xff]
    %v1276 = vld [vmem:[%s6 + $0x48] sm:$0xff]
    %v1277 = vld [vmem:[%s6 + $0x50] sm:$0xff]
    %v1278 = vld [vmem:[%s6 + $0x58] sm:$0xff]
    %v1279 = vld [vmem:[%s6 + $0x60] sm:$0xff]
    %v1280 = vld [vmem:[%s6 + $0x68] sm:$0xff]
    %v1281 = vld [vmem:[%s6 + $0x70] sm:$0xff]
    %v1282 = vld [vmem:[%s6 + $0x78] sm:$0xff]
    %v1283 = vld [vmem:[%s6 + $0x80] sm:$0xff]
    %v1284 = vld [vmem:[%s6 + $0x88] sm:$0xff]
    %v1285 = vld [vmem:[%s6 + $0x90] sm:$0xff]
    %v1286 = vld [vmem:[%s6 + $0x98] sm:$0xff]
    %v1287 = vld [vmem:[%s6 + $0xa0] sm:$0xff]
    %v1288 = vld [vmem:[%s6 + $0xa8] sm:$0xff]
    %v1289 = vld [vmem:[%s6 + $0xb0] sm:$0xff]
    %v1290 = vld [vmem:[%s6 + $0xb8] sm:$0xff]
    %v1291 = vld [vmem:[%s6 + $0xc0] sm:$0xff]
    %v1292 = vld [vmem:[%s6 + $0xc8] sm:$0xff]
    %v1293 = vld [vmem:[%s6 + $0xd0] sm:$0xff]
    %v1294 = vld [vmem:[%s6 + $0xd8] sm:$0xff]
    %v1295 = vld [vmem:[%s6 + $0xe0] sm:$0xff]
    %v1296 = vld [vmem:[%s6 + $0xe8] sm:$0xff]
    %v1297 = vld [vmem:[%s6 + $0xf0] sm:$0xff]
    %v1298 = vld [vmem:[%s6 + $0xf8] sm:$0xff]
    %v1299 = vld [vmem:[%s6 + $0x100] sm:$0xff]
    %v1300 = vld [vmem:[%s6 + $0x108] sm:$0xff]
    %v1301 = vld [vmem:[%s6 + $0x110] sm:$0xff]
    %v1302 = vld [vmem:[%s6 + $0x118] sm:$0xff]
    %v1303 = vld [vmem:[%s6 + $0x120] sm:$0xff]
    %v1304 = vld [vmem:[%s6 + $0x128] sm:$0xff]
    %v1305 = vld [vmem:[%s6 + $0x130] sm:$0xff]
    %v1306 = vld [vmem:[%s6 + $0x138] sm:$0xff]
    %v1307 = vld [vmem:[%s6 + $0x140] sm:$0xff]
    %v1308 = vld [vmem:[%s6 + $0x148] sm:$0xff]
    %v1309 = vld [vmem:[%s6 + $0x150] sm:$0xff]
    %v1310 = vld [vmem:[%s6 + $0x158] sm:$0xff]
    %v1311 = vld [vmem:[%s6 + $0x160] sm:$0xff]
    %v1312 = vld [vmem:[%s6 + $0x168] sm:$0xff]
    %v1313 = vld [vmem:[%s6 + $0x170] sm:$0xff]
    %v1314 = vld [vmem:[%s6 + $0x178] sm:$0xff]
    %v1315 = vld [vmem:[%s6 + $0x180] sm:$0xff]
    %v1316 = vld [vmem:[%s6 + $0x188] sm:$0xff]
    %v1317 = vld [vmem:[%s6 + $0x190] sm:$0xff]
    %v1318 = vld [vmem:[%s6 + $0x198] sm:$0xff]
    %v1319 = vld [vmem:[%s6 + $0x1a0] sm:$0xff]
    %v1320 = vld [vmem:[%s6 + $0x1a8] sm:$0xff]
    %v1321 = vld [vmem:[%s6 + $0x1b0] sm:$0xff]
    %v1322 = vld [vmem:[%s6 + $0x1b8] sm:$0xff]
    %v1323 = vld [vmem:[%s6 + $0x1c0] sm:$0xff]
    %v1324 = vld [vmem:[%s6 + $0x1c8] sm:$0xff]
    %v1325 = vld [vmem:[%s6 + $0x1d0] sm:$0xff]
    %v1326 = vld [vmem:[%s6 + $0x1d8] sm:$0xff]
    %v1327 = vld [vmem:[%s6 + $0x1e0] sm:$0xff]
    %v1328 = vld [vmem:[%s6 + $0x1e8] sm:$0xff]
    %v1329 = vld [vmem:[%s6 + $0x1f0] sm:$0xff]
    %v1330 = vld [vmem:[%s6 + $0x1f8] sm:$0xff]
    %v1331 = vld [vmem:[%s6 + $0x200] sm:$0xff]
    %v1332 = vld [vmem:[%s6 + $0x208] sm:$0xff]
    %v1333 = vld [vmem:[%s6 + $0x210] sm:$0xff]
    %v1334 = vld [vmem:[%s6 + $0x218] sm:$0xff]
    %v1335 = vld [vmem:[%s6 + $0x220] sm:$0xff]
    %v1336 = vld [vmem:[%s6 + $0x228] sm:$0xff]
    %v1337 = vld [vmem:[%s6 + $0x230] sm:$0xff]
    %v1338 = vld [vmem:[%s6 + $0x238] sm:$0xff]
    %v1339 = vld [vmem:[%s6 + $0x240] sm:$0xff]
    %v1340 = vld [vmem:[%s6 + $0x248] sm:$0xff]
    %v1341 = vld [vmem:[%s6 + $0x250] sm:$0xff]
    %v1342 = vsel %vm460, %v1261, 0
    %1344 = vmatpush.msra.mxu0 %v1282
    %1345 = vmatpush.msra.mxu0 %v1281
    %1346 = vmatpush.msra.mxu0 %v1280
    %1347 = vmatpush.msra.mxu0 %v1279
    %1348 = vmatpush.msra.mxu0 %v1278
    %1349 = vmatpush.msra.mxu0 %v1277
    %1350 = vmatpush.msra.mxu0 %v1276
    %1351 = vmatpush.msra.mxu0 %v1275
    %1352 = vmatpush.msra.mxu0 %v1274
    %1353 = vmatpush.msra.mxu0 %v1273
    %1354 = vmatpush.msra.mxu0 %v1272
    %1355 = vmatpush.msra.mxu0 %v1271
    %1356 = vmatpush.msra.mxu0 %v1270
    %1357 = vmatpush.msra.mxu0 %v1269
    %1358 = vmatpush.msra.mxu0 %v1268
    %1359 = vmatpush.msra.mxu0 %v1267
    %1360 = vmatmul.f32.gmra.mxu0 %v1263
    %v1361 = vpop.f32.mrf.mxu0
    %v1362 = vadd.f32 0.0, %v1361
    %1363 = vdwg.mxu0
    %1364 = vmatpush.msra.mxu0 %v1298
    %1365 = vmatpush.msra.mxu0 %v1297
    %1366 = vmatpush.msra.mxu0 %v1296
    %1367 = vmatpush.msra.mxu0 %v1295
    %1368 = vmatpush.msra.mxu0 %v1294
    %1369 = vmatpush.msra.mxu0 %v1293
    %1370 = vmatpush.msra.mxu0 %v1292
    %1371 = vmatpush.msra.mxu0 %v1291
    %1372 = vmatpush.msra.mxu0 %v1290
    %1373 = vmatpush.msra.mxu0 %v1289
    %1374 = vmatpush.msra.mxu0 %v1288
    %1375 = vmatpush.msra.mxu0 %v1287
    %1376 = vmatpush.msra.mxu0 %v1286
    %1377 = vmatpush.msra.mxu0 %v1285
    %1378 = vmatpush.msra.mxu0 %v1284
    %1379 = vmatpush.msra.mxu0 %v1283
    %1380 = vmatmul.f32.gmra.mxu0 %v1264
    %v1381 = vpop.f32.mrf.mxu0
    %v1382 = vadd.f32 %v1362, %v1381
    %1383 = vdwg.mxu0
    %1384 = vmatpush.msra.mxu0 %v1314
    %1385 = vmatpush.msra.mxu0 %v1313
    %1386 = vmatpush.msra.mxu0 %v1312
    %1387 = vmatpush.msra.mxu0 %v1311
    %1388 = vmatpush.msra.mxu0 %v1310
    %1389 = vmatpush.msra.mxu0 %v1309
    %1390 = vmatpush.msra.mxu0 %v1308
    %1391 = vmatpush.msra.mxu0 %v1307
    %1392 = vmatpush.msra.mxu0 %v1306
    %1393 = vmatpush.msra.mxu0 %v1305
    %1394 = vmatpush.msra.mxu0 %v1304
    %1395 = vmatpush.msra.mxu0 %v1303
    %1396 = vmatpush.msra.mxu0 %v1302
    %1397 = vmatpush.msra.mxu0 %v1301
    %1398 = vmatpush.msra.mxu0 %v1300
    %1399 = vmatpush.msra.mxu0 %v1299
    %1400 = vmatmul.f32.gmra.mxu0 %v1265
    %v1401 = vpop.f32.mrf.mxu0
    %v1402 = vadd.f32 %v1382, %v1401
    %1403 = vdwg.mxu0
    %1404 = vmatpush.msra.mxu0 %v1330
    %1405 = vmatpush.msra.mxu0 %v1329
    %1406 = vmatpush.msra.mxu0 %v1328
    %1407 = vmatpush.msra.mxu0 %v1327
    %1408 = vmatpush.msra.mxu0 %v1326
    %1409 = vmatpush.msra.mxu0 %v1325
    %1410 = vmatpush.msra.mxu0 %v1324
    %1411 = vmatpush.msra.mxu0 %v1323
    %1412 = vmatpush.msra.mxu0 %v1322
    %1413 = vmatpush.msra.mxu0 %v1321
    %1414 = vmatpush.msra.mxu0 %v1320
    %1415 = vmatpush.msra.mxu0 %v1319
    %1416 = vmatpush.msra.mxu0 %v1318
    %1417 = vmatpush.msra.mxu0 %v1317
    %1418 = vmatpush.msra.mxu0 %v1316
    %1419 = vmatpush.msra.mxu0 %v1315
    %1420 = vmatmul.f32.gmra.mxu0 %v1266
    %v1421 = vpop.f32.mrf.mxu0
    %v1422 = vadd.f32 %v1402, %v1421
    %1423 = vdwg.mxu0
    %1424 = vmatpush.msra.mxu0 0.0
    %1425 = vmatpush.msra.mxu0 0.0
    %1426 = vmatpush.msra.mxu0 0.0
    %1427 = vmatpush.msra.mxu0 0.0
    %1428 = vmatpush.msra.mxu0 0.0
    %1429 = vmatpush.msra.mxu0 %v1341
    %1430 = vmatpush.msra.mxu0 %v1340
    %1431 = vmatpush.msra.mxu0 %v1339
    %1432 = vmatpush.msra.mxu0 %v1338
    %1433 = vmatpush.msra.mxu0 %v1337
    %1434 = vmatpush.msra.mxu0 %v1336
    %1435 = vmatpush.msra.mxu0 %v1335
    %1436 = vmatpush.msra.mxu0 %v1334
    %1437 = vmatpush.msra.mxu0 %v1333
    %1438 = vmatpush.msra.mxu0 %v1332
    %1439 = vmatpush.msra.mxu0 %v1331
    %1440 = vmatmul.f32.gmra.mxu0 %v1342
    %v1441 = vpop.f32.mrf.mxu0
    %v1442 = vadd.f32 %v1422, %v1441
    %1443 = vdwg.mxu0
    %v1444 = vld [vmem:[%s7] sm:$0xff]
    %v1445 = vld [vmem:[%s7 + $0x8] sm:$0xff]
    %v1446 = vld [vmem:[%s7 + $0x10] sm:$0xff]
    %v1447 = vld [vmem:[%s7 + $0x18] sm:$0xff]
    %v1448 = vld [vmem:[%s7 + $0x20] sm:$0xff]
    %v1449 = vld [vmem:[%s7 + $0x28] sm:$0xff]
    %v1450 = vld [vmem:[%s7 + $0x30] sm:$0xff]
    %v1451 = vld [vmem:[%s7 + $0x38] sm:$0xff]
    %v1452 = vld [vmem:[%s7 + $0x40] sm:$0xff]
    %v1453 = vld [vmem:[%s7 + $0x48] sm:$0xff]
    %v1454 = vld [vmem:[%s7 + $0x50] sm:$0xff]
    %v1455 = vld [vmem:[%s7 + $0x58] sm:$0xff]
    %v1456 = vld [vmem:[%s7 + $0x60] sm:$0xff]
    %v1457 = vld [vmem:[%s7 + $0x68] sm:$0xff]
    %v1458 = vld [vmem:[%s7 + $0x70] sm:$0xff]
    %v1459 = vld [vmem:[%s7 + $0x78] sm:$0xff]
    %v1460 = vld [vmem:[%s7 + $0x80] sm:$0xff]
    %v1461 = vld [vmem:[%s7 + $0x88] sm:$0xff]
    %v1462 = vld [vmem:[%s7 + $0x90] sm:$0xff]
    %v1463 = vld [vmem:[%s7 + $0x98] sm:$0xff]
    %v1464 = vld [vmem:[%s7 + $0xa0] sm:$0xff]
    %v1465 = vld [vmem:[%s7 + $0xa8] sm:$0xff]
    %v1466 = vld [vmem:[%s7 + $0xb0] sm:$0xff]
    %v1467 = vld [vmem:[%s7 + $0xb8] sm:$0xff]
    %v1468 = vld [vmem:[%s7 + $0xc0] sm:$0xff]
    %v1469 = vld [vmem:[%s7 + $0xc8] sm:$0xff]
    %v1470 = vld [vmem:[%s7 + $0xd0] sm:$0xff]
    %v1471 = vld [vmem:[%s7 + $0xd8] sm:$0xff]
    %v1472 = vld [vmem:[%s7 + $0xe0] sm:$0xff]
    %v1473 = vld [vmem:[%s7 + $0xe8] sm:$0xff]
    %v1474 = vld [vmem:[%s7 + $0xf0] sm:$0xff]
    %v1475 = vld [vmem:[%s7 + $0xf8] sm:$0xff]
    %v1476 = vld [vmem:[%s7 + $0x100] sm:$0xff]
    %v1477 = vld [vmem:[%s7 + $0x108] sm:$0xff]
    %v1478 = vld [vmem:[%s7 + $0x110] sm:$0xff]
    %v1479 = vld [vmem:[%s7 + $0x118] sm:$0xff]
    %v1480 = vld [vmem:[%s7 + $0x120] sm:$0xff]
    %v1481 = vld [vmem:[%s7 + $0x128] sm:$0xff]
    %v1482 = vld [vmem:[%s7 + $0x130] sm:$0xff]
    %v1483 = vld [vmem:[%s7 + $0x138] sm:$0xff]
    %v1484 = vld [vmem:[%s7 + $0x140] sm:$0xff]
    %v1485 = vld [vmem:[%s7 + $0x148] sm:$0xff]
    %v1486 = vld [vmem:[%s7 + $0x150] sm:$0xff]
    %v1487 = vld [vmem:[%s7 + $0x158] sm:$0xff]
    %v1488 = vld [vmem:[%s7 + $0x160] sm:$0xff]
    %v1489 = vld [vmem:[%s7 + $0x168] sm:$0xff]
    %v1490 = vld [vmem:[%s7 + $0x170] sm:$0xff]
    %v1491 = vld [vmem:[%s7 + $0x178] sm:$0xff]
    %v1492 = vld [vmem:[%s7 + $0x180] sm:$0xff]
    %v1493 = vld [vmem:[%s7 + $0x188] sm:$0xff]
    %v1494 = vld [vmem:[%s7 + $0x190] sm:$0xff]
    %v1495 = vld [vmem:[%s7 + $0x198] sm:$0xff]
    %v1496 = vld [vmem:[%s7 + $0x1a0] sm:$0xff]
    %v1497 = vld [vmem:[%s7 + $0x1a8] sm:$0xff]
    %v1498 = vld [vmem:[%s7 + $0x1b0] sm:$0xff]
    %v1499 = vld [vmem:[%s7 + $0x1b8] sm:$0xff]
    %v1500 = vld [vmem:[%s7 + $0x1c0] sm:$0xff]
    %v1501 = vld [vmem:[%s7 + $0x1c8] sm:$0xff]
    %v1502 = vld [vmem:[%s7 + $0x1d0] sm:$0xff]
    %v1503 = vld [vmem:[%s7 + $0x1d8] sm:$0xff]
    %v1504 = vld [vmem:[%s7 + $0x1e0] sm:$0xff]
    %v1505 = vld [vmem:[%s7 + $0x1e8] sm:$0xff]
    %v1506 = vld [vmem:[%s7 + $0x1f0] sm:$0xff]
    %v1507 = vld [vmem:[%s7 + $0x1f8] sm:$0xff]
    %v1508 = vld [vmem:[%s7 + $0x200] sm:$0xff]
    %v1509 = vld [vmem:[%s7 + $0x208] sm:$0xff]
    %v1510 = vld [vmem:[%s7 + $0x210] sm:$0xff]
    %v1511 = vld [vmem:[%s7 + $0x218] sm:$0xff]
    %v1512 = vld [vmem:[%s7 + $0x220] sm:$0xff]
    %v1513 = vld [vmem:[%s7 + $0x228] sm:$0xff]
    %v1514 = vld [vmem:[%s7 + $0x230] sm:$0xff]
    %v1515 = vld [vmem:[%s7 + $0x238] sm:$0xff]
    %v1516 = vld [vmem:[%s7 + $0x240] sm:$0xff]
    %v1517 = vld [vmem:[%s7 + $0x248] sm:$0xff]
    %v1518 = vld [vmem:[%s7 + $0x250] sm:$0xff]
    %1519 = vmatpush.msra.mxu0 %v1459
    %1520 = vmatpush.msra.mxu0 %v1458
    %1521 = vmatpush.msra.mxu0 %v1457
    %1522 = vmatpush.msra.mxu0 %v1456
    %1523 = vmatpush.msra.mxu0 %v1455
    %1524 = vmatpush.msra.mxu0 %v1454
    %1525 = vmatpush.msra.mxu0 %v1453
    %1526 = vmatpush.msra.mxu0 %v1452
    %1527 = vmatpush.msra.mxu0 %v1451
    %1528 = vmatpush.msra.mxu0 %v1450
    %1529 = vmatpush.msra.mxu0 %v1449
    %1530 = vmatpush.msra.mxu0 %v1448
    %1531 = vmatpush.msra.mxu0 %v1447
    %1532 = vmatpush.msra.mxu0 %v1446
    %1533 = vmatpush.msra.mxu0 %v1445
    %1534 = vmatpush.msra.mxu0 %v1444
    %1535 = vmatmul.f32.gmra.mxu0 %v1263
    %v1536 = vpop.f32.mrf.mxu0
    %v1537 = vadd.f32 0.0, %v1536
    %1538 = vdwg.mxu0
    %1539 = vmatpush.msra.mxu0 %v1475
    %1540 = vmatpush.msra.mxu0 %v1474
    %1541 = vmatpush.msra.mxu0 %v1473
    %1542 = vmatpush.msra.mxu0 %v1472
    %1543 = vmatpush.msra.mxu0 %v1471
    %1544 = vmatpush.msra.mxu0 %v1470
    %1545 = vmatpush.msra.mxu0 %v1469
    %1546 = vmatpush.msra.mxu0 %v1468
    %1547 = vmatpush.msra.mxu0 %v1467
    %1548 = vmatpush.msra.mxu0 %v1466
    %1549 = vmatpush.msra.mxu0 %v1465
    %1550 = vmatpush.msra.mxu0 %v1464
    %1551 = vmatpush.msra.mxu0 %v1463
    %1552 = vmatpush.msra.mxu0 %v1462
    %1553 = vmatpush.msra.mxu0 %v1461
    %1554 = vmatpush.msra.mxu0 %v1460
    %1555 = vmatmul.f32.gmra.mxu0 %v1264
    %v1556 = vpop.f32.mrf.mxu0
    %v1557 = vadd.f32 %v1537, %v1556
    %1558 = vdwg.mxu0
    %1559 = vmatpush.msra.mxu0 %v1491
    %1560 = vmatpush.msra.mxu0 %v1490
    %1561 = vmatpush.msra.mxu0 %v1489
    %1562 = vmatpush.msra.mxu0 %v1488
    %1563 = vmatpush.msra.mxu0 %v1487
    %1564 = vmatpush.msra.mxu0 %v1486
    %1565 = vmatpush.msra.mxu0 %v1485
    %1566 = vmatpush.msra.mxu0 %v1484
    %1567 = vmatpush.msra.mxu0 %v1483
    %1568 = vmatpush.msra.mxu0 %v1482
    %1569 = vmatpush.msra.mxu0 %v1481
    %1570 = vmatpush.msra.mxu0 %v1480
    %1571 = vmatpush.msra.mxu0 %v1479
    %1572 = vmatpush.msra.mxu0 %v1478
    %1573 = vmatpush.msra.mxu0 %v1477
    %1574 = vmatpush.msra.mxu0 %v1476
    %1575 = vmatmul.f32.gmra.mxu0 %v1265
    %v1576 = vpop.f32.mrf.mxu0
    %v1577 = vadd.f32 %v1557, %v1576
    %1578 = vdwg.mxu0
    %1579 = vmatpush.msra.mxu0 %v1507
    %1580 = vmatpush.msra.mxu0 %v1506
    %1581 = vmatpush.msra.mxu0 %v1505
    %1582 = vmatpush.msra.mxu0 %v1504
    %1583 = vmatpush.msra.mxu0 %v1503
    %1584 = vmatpush.msra.mxu0 %v1502
    %1585 = vmatpush.msra.mxu0 %v1501
    %1586 = vmatpush.msra.mxu0 %v1500
    %1587 = vmatpush.msra.mxu0 %v1499
    %1588 = vmatpush.msra.mxu0 %v1498
    %1589 = vmatpush.msra.mxu0 %v1497
    %1590 = vmatpush.msra.mxu0 %v1496
    %1591 = vmatpush.msra.mxu0 %v1495
    %1592 = vmatpush.msra.mxu0 %v1494
    %1593 = vmatpush.msra.mxu0 %v1493
    %1594 = vmatpush.msra.mxu0 %v1492
    %1595 = vmatmul.f32.gmra.mxu0 %v1266
    %v1596 = vpop.f32.mrf.mxu0
    %v1597 = vadd.f32 %v1577, %v1596
    %1598 = vdwg.mxu0
    %1599 = vmatpush.msra.mxu0 0.0
    %1600 = vmatpush.msra.mxu0 0.0
    %1601 = vmatpush.msra.mxu0 0.0
    %1602 = vmatpush.msra.mxu0 0.0
    %1603 = vmatpush.msra.mxu0 0.0
    %1604 = vmatpush.msra.mxu0 %v1518
    %1605 = vmatpush.msra.mxu0 %v1517
    %1606 = vmatpush.msra.mxu0 %v1516
    %1607 = vmatpush.msra.mxu0 %v1515
    %1608 = vmatpush.msra.mxu0 %v1514
    %1609 = vmatpush.msra.mxu0 %v1513
    %1610 = vmatpush.msra.mxu0 %v1512
    %1611 = vmatpush.msra.mxu0 %v1511
    %1612 = vmatpush.msra.mxu0 %v1510
    %1613 = vmatpush.msra.mxu0 %v1509
    %1614 = vmatpush.msra.mxu0 %v1508
    %1615 = vmatmul.f32.gmra.mxu0 %v1342
    %v1616 = vpop.f32.mrf.mxu0
    %v1617 = vadd.f32 %v1597, %v1616
    %1618 = vdwg.mxu0
    %v1619 = vmax.f32 %v1442, %v1617
    %v1620 = vld [vmem:[%s9] sm:$0xf]
    %v1622 = vsel %vm740, %v1620, 0
    %1624 = vmatpush.msra.mxu0 0.0
    %1625 = vmatpush.msra.mxu0 0.0
    %1626 = vmatpush.msra.mxu0 0.0
    %1627 = vmatpush.msra.mxu0 0.0
    %1628 = vmatpush.msra.mxu0 0.0
    %1629 = vmatpush.msra.mxu0 0.0
    %1630 = vmatpush.msra.mxu0 0.0
    %1631 = vmatpush.msra.mxu0 0.0
    %1632 = vmatpush.msra.mxu0 0.0
    %1633 = vmatpush.msra.mxu0 0.0
    %1634 = vmatpush.msra.mxu0 0.0
    %1635 = vmatpush.msra.mxu0 0.0
    %1636 = vmatpush.msra.mxu0 0.0
    %1637 = vmatpush.msra.mxu0 0.0
    %1638 = vmatpush.msra.mxu0 0.0
    %1639 = vmatpush.msra.mxu0 %v1619
    %1640 = vmatmul.f32.gmra.mxu0 %v1622
    %v1641 = vpop.f32.mrf.mxu0
    %v1642 = vadd.f32 0.0, %v1641
    %1643 = vdwg.mxu0
    %v1644 = vld [vmem:[%s10] sm:$0xf]
    %v1646 = vsel %vm740, %v1644, 0
    %1648 = vmatpush.msra.mxu0 0.0
    %1649 = vmatpush.msra.mxu0 0.0
    %1650 = vmatpush.msra.mxu0 0.0
    %1651 = vmatpush.msra.mxu0 0.0
    %1652 = vmatpush.msra.mxu0 0.0
    %1653 = vmatpush.msra.mxu0 0.0
    %1654 = vmatpush.msra.mxu0 0.0
    %1655 = vmatpush.msra.mxu0 0.0
    %1656 = vmatpush.msra.mxu0 0.0
    %1657 = vmatpush.msra.mxu0 0.0
    %1658 = vmatpush.msra.mxu0 0.0
    %1659 = vmatpush.msra.mxu0 0.0
    %1660 = vmatpush.msra.mxu0 0.0
    %1661 = vmatpush.msra.mxu0 0.0
    %1662 = vmatpush.msra.mxu0 0.0
    %1663 = vmatpush.msra.mxu0 %v1619
    %1664 = vmatmul.f32.gmra.mxu0 %v1646
    %v1665 = vpop.f32.mrf.mxu0
    %v1666 = vadd.f32 0.0, %v1665
    %1667 = vdwg.mxu0
    %v1668 = vmax.f32 %v1642, %v1666
    %v1669 = vld [vmem:[%s8] sm:$0x1]
    %v1671 = vperm.slane %v1669, 0
    %v1673 = vadd.f32 %v1668, %v1671
    %v1674 = vmax.f32 %v1673, 0.0
    %1675 = vst.msk [vmem:[#allocation3] sm:$0xf] %vm795, %v1674
    %v1676 = vld [vmem:[#allocation3] sm:$0x1]
    %v1677 = vld [vmem:[#allocation3 + $0x1] sm:$0x1]
    %v1678 = vld [vmem:[#allocation3 + $0x2] sm:$0x1]
    %v1679 = vld [vmem:[#allocation3 + $0x3] sm:$0x1]
    %1681 = vrot.lane.b32.xlu0 %v1677, 80
    %v1682 = vpop.permute.xlu0 %1681
    %1685 = vrot.lane.b32.xlu0 %v1678, 32
    %v1686 = vpop.permute.xlu0 %1685
    %1689 = vrot.lane.b32.xlu0 %v1679, 112
    %v1690 = vpop.permute.xlu0 %1689
    %v1692 = vsel %vm813, %v1676, %v1682
    %v1693 = vsel %vm815, %v1682, %v1686
    %v1694 = vsel %vm120, %v1693, %v1690
    %v1695 = vld [vmem:[%s11] sm:$0xff]
    %v1696 = vld [vmem:[%s11 + $0x8] sm:$0xff]
    %v1697 = vld [vmem:[%s11 + $0x10] sm:$0xff]
    %v1698 = vld [vmem:[%s11 + $0x18] sm:$0xff]
    %v1699 = vld [vmem:[%s11 + $0x20] sm:$0xff]
    %v1700 = vld [vmem:[%s11 + $0x28] sm:$0xff]
    %v1701 = vld [vmem:[%s11 + $0x30] sm:$0xff]
    %v1702 = vld [vmem:[%s11 + $0x38] sm:$0xff]
    %v1703 = vld [vmem:[%s11 + $0x40] sm:$0xff]
    %v1704 = vld [vmem:[%s11 + $0x48] sm:$0xff]
    %v1705 = vld [vmem:[%s11 + $0x50] sm:$0xff]
    %v1706 = vld [vmem:[%s11 + $0x58] sm:$0xff]
    %v1707 = vld [vmem:[%s11 + $0x60] sm:$0xff]
    %v1708 = vld [vmem:[%s11 + $0x68] sm:$0xff]
    %v1709 = vld [vmem:[%s11 + $0x70] sm:$0xff]
    %v1710 = vld [vmem:[%s11 + $0x78] sm:$0xff]
    %v1711 = vld [vmem:[%s11 + $0x80] sm:$0xff]
    %v1712 = vld [vmem:[%s11 + $0x88] sm:$0xff]
    %v1713 = vld [vmem:[%s11 + $0x90] sm:$0xff]
    %v1714 = vld [vmem:[%s11 + $0x98] sm:$0xff]
    %v1715 = vld [vmem:[%s11 + $0xa0] sm:$0xff]
    %v1716 = vld [vmem:[%s11 + $0xa8] sm:$0xff]
    %v1717 = vld [vmem:[%s11 + $0xb0] sm:$0xff]
    %v1718 = vld [vmem:[%s11 + $0xb8] sm:$0xff]
    %v1719 = vld [vmem:[%s11 + $0xc0] sm:$0xff]
    %v1720 = vld [vmem:[%s11 + $0xc8] sm:$0xff]
    %v1721 = vld [vmem:[%s11 + $0xd0] sm:$0xff]
    %v1722 = vld [vmem:[%s11 + $0xd8] sm:$0xff]
    %v1723 = vld [vmem:[%s11 + $0xe0] sm:$0xff]
    %v1724 = vld [vmem:[%s11 + $0xe8] sm:$0xff]
    %v1725 = vld [vmem:[%s11 + $0xf0] sm:$0xff]
    %v1726 = vld [vmem:[%s11 + $0xf8] sm:$0xff]
    %v1727 = vld [vmem:[%s11 + $0x100] sm:$0xff]
    %v1728 = vld [vmem:[%s11 + $0x108] sm:$0xff]
    %v1729 = vld [vmem:[%s11 + $0x110] sm:$0xff]
    %v1730 = vld [vmem:[%s11 + $0x118] sm:$0xff]
    %v1731 = vld [vmem:[%s11 + $0x120] sm:$0xff]
    %v1732 = vld [vmem:[%s11 + $0x128] sm:$0xff]
    %v1733 = vld [vmem:[%s11 + $0x130] sm:$0xff]
    %v1734 = vld [vmem:[%s11 + $0x138] sm:$0xff]
    %v1735 = vld [vmem:[%s12] sm:$0x1]
    %v1736 = vsel %vm859, %v1690, 0
    %1738 = vmatpush.msra.mxu0 %v1710
    %1739 = vmatpush.msra.mxu0 %v1709
    %1740 = vmatpush.msra.mxu0 %v1708
    %1741 = vmatpush.msra.mxu0 %v1707
    %1742 = vmatpush.msra.mxu0 %v1706
    %1743 = vmatpush.msra.mxu0 %v1705
    %1744 = vmatpush.msra.mxu0 %v1704
    %1745 = vmatpush.msra.mxu0 %v1703
    %1746 = vmatpush.msra.mxu0 %v1702
    %1747 = vmatpush.msra.mxu0 %v1701
    %1748 = vmatpush.msra.mxu0 %v1700
    %1749 = vmatpush.msra.mxu0 %v1699
    %1750 = vmatpush.msra.mxu0 %v1698
    %1751 = vmatpush.msra.mxu0 %v1697
    %1752 = vmatpush.msra.mxu0 %v1696
    %1753 = vmatpush.msra.mxu0 %v1695
    %1754 = vmatmul.f32.gmra.mxu0 %v1692
    %v1755 = vpop.f32.mrf.mxu0
    %v1756 = vadd.f32 %v1735, %v1755
    %1757 = vdwg.mxu0
    %1758 = vmatpush.msra.mxu0 %v1726
    %1759 = vmatpush.msra.mxu0 %v1725
    %1760 = vmatpush.msra.mxu0 %v1724
    %1761 = vmatpush.msra.mxu0 %v1723
    %1762 = vmatpush.msra.mxu0 %v1722
    %1763 = vmatpush.msra.mxu0 %v1721
    %1764 = vmatpush.msra.mxu0 %v1720
    %1765 = vmatpush.msra.mxu0 %v1719
    %1766 = vmatpush.msra.mxu0 %v1718
    %1767 = vmatpush.msra.mxu0 %v1717
    %1768 = vmatpush.msra.mxu0 %v1716
    %1769 = vmatpush.msra.mxu0 %v1715
    %1770 = vmatpush.msra.mxu0 %v1714
    %1771 = vmatpush.msra.mxu0 %v1713
    %1772 = vmatpush.msra.mxu0 %v1712
    %1773 = vmatpush.msra.mxu0 %v1711
    %1774 = vmatmul.f32.gmra.mxu0 %v1694
    %v1775 = vpop.f32.mrf.mxu0
    %v1776 = vadd.f32 %v1756, %v1775
    %1777 = vdwg.mxu0
    %1778 = vmatpush.msra.mxu0 0.0
    %1779 = vmatpush.msra.mxu0 0.0
    %1780 = vmatpush.msra.mxu0 0.0
    %1781 = vmatpush.msra.mxu0 0.0
    %1782 = vmatpush.msra.mxu0 0.0
    %1783 = vmatpush.msra.mxu0 0.0
    %1784 = vmatpush.msra.mxu0 0.0
    %1785 = vmatpush.msra.mxu0 0.0
    %1786 = vmatpush.msra.mxu0 %v1734
    %1787 = vmatpush.msra.mxu0 %v1733
    %1788 = vmatpush.msra.mxu0 %v1732
    %1789 = vmatpush.msra.mxu0 %v1731
    %1790 = vmatpush.msra.mxu0 %v1730
    %1791 = vmatpush.msra.mxu0 %v1729
    %1792 = vmatpush.msra.mxu0 %v1728
    %1793 = vmatpush.msra.mxu0 %v1727
    %1794 = vmatmul.f32.gmra.mxu0 %v1736
    %v1795 = vpop.f32.mrf.mxu0
    %v1796 = vadd.f32 %v1776, %v1795
    %1797 = vdwg.mxu0
    %v1798 = vsel %vm922, %v1796, -inf
    %1799 = vmax.xlane.f32.xlu0 %v1798
    %v1800 = vpop.xlane.xlu0 %1799
    %v1801 = vsub.f32 %v1796, %v1800
    %v1802 = vmul.f32 %v1801, 1.442695
    %v1803 = vpow.pop %v1802
    %v1804 = vsel %vm922, %v1803, 0.0
    %1805 = vadd.xlane.f32.xlu0 %v1804
    %v1806 = vpop.xlane.xlu0 %1805
    %v1807 = vlog2.pop %v1806
    %v1808 = vmul.f32 %v1807, 0.6931472
    %v1809 = vadd.f32 %v1800, %v1808
    %v1810 = vsub.f32 %v1796, %v1809
    %1811 = vst.msk [vmem:[#allocation4 + $0x1] sm:$0x1] %vm922, %v1810
    // Predicated region
    $region54: #{net_forward.1} parent=1 // pred_check
      _
    $region55: #{net_forward.1} parent=1 // pred_check_branch
      %1813 = sbr.rel (0) target = $region57
    $region56: #{net_forward.1} parent=1 // pred_region
      %1815 = vsyncadd [#allocation5], 0
      %s1817 = sshll.u32 [#allocation4], 4
      %s1818 = int_to_ptr.vmem [resolvable:$true] %s1817
      %s1819 = sshll.u32 %s13, 4
      %s1820 = int_to_ptr.hbm [resolvable:$true] %s1819
      %1822 = dma.vmem_to_hbm [thread:$0]  %s1818, 32, %s1820, [#allocation5]
    $region57: #{net_forward.1} parent=1 // pred_fallthru
      _
    // Predicated region
    $region58: #{net_forward.1} parent=1 // pred_check
      _
    $region59: #{net_forward.1} parent=1 // pred_check_branch
      %1824 = sbr.rel (0) target = $region61
    $region60: #{net_forward.1} parent=1 // pred_region
      %1826 = dma.done [#allocation5], 32
    $region61: #{net_forward.1} parent=1 // pred_fallthru
      _
    %1827 = vsyncpa [#allocation5], 1

</llo_original>
